<compile_context>
chip_gen: v7x
topology: tpu7x:2x2x1
jax: 0.10.0
libtpu: 0.0.40
codegen_flags: <defaults>
</compile_context>

<pallas_src>
import functools

import jax
import jax.numpy as jnp
from jax.experimental import pallas as pl
from jax.experimental.pallas import tpu as pltpu


# ----------------------------------------------------------------------------
# Fused AttnBlock kernel. Grid = (B, HW // tq).
# ----------------------------------------------------------------------------
def _attn_block_kernel(x_ref, gamma_ref, beta_ref, grp_ref,
                       wqkv_ref, bqkv_ref, wp_ref, bp_ref,
                       o_ref,
                       q_scr, k_scr, v_scr,
                       *, eps, tq):
    HW = x_ref.shape[1]
    C = o_ref.shape[-1]
    qt = pl.program_id(1)

    # ---- once per batch: GroupNorm + fused q/k/v projection -> bf16 scratch ----
    @pl.when(qt == 0)
    def _():
        x = x_ref[0]                                              # (HW, C) f32
        ones_row = jnp.ones((1, HW), jnp.float32)
        # Per-channel spatial sums on the MXU (no sublane reductions).
        s1 = jnp.dot(ones_row, x, preferred_element_type=jnp.float32)       # (1, C)
        s2 = jnp.dot(ones_row, x * x, preferred_element_type=jnp.float32)   # (1, C)
        # Host-precomputed block-diagonal group-average matrix (1/(HW*gs) folded in).
        mean = jnp.dot(s1, grp_ref[...], preferred_element_type=jnp.float32)
        ex2 = jnp.dot(s2, grp_ref[...], preferred_element_type=jnp.float32)
        inv_std = jax.lax.rsqrt(ex2 - mean * mean + eps)                    # EUP
        h = ((x - mean) * (inv_std * gamma_ref[...]) + beta_ref[...])
        h = h.astype(jnp.bfloat16)                                # bf16 MXU input
        # Single fused projection: (HW, C) @ (C, 3C), f32 accumulation.
        qkv = jnp.dot(h, wqkv_ref[...],
                      preferred_element_type=jnp.float32) + bqkv_ref[...]
        q_scr[...] = qkv[:, :C].astype(jnp.bfloat16)     # scale already folded into wq/bq
        k_scr[...] = qkv[:, C:2 * C].astype(jnp.bfloat16)
        v_scr[...] = qkv[:, 2 * C:].astype(jnp.bfloat16)

    # ---- per query-tile: scores, softmax, P@V, proj_out, residual -------------
    row0 = pl.multiple_of(qt * tq, tq)
    q_t = q_scr[pl.ds(row0, tq), :]                               # (tq, C) bf16
    s = jax.lax.dot_general(q_t, k_scr[...], (((1,), (1,)), ((), ())),
                            preferred_element_type=jnp.float32)   # (tq, HW) f32
    m = jnp.max(s, axis=-1, keepdims=True)
    p = jnp.exp(s - m)                                            # f32 elementwise
    denom = jnp.sum(p, axis=-1, keepdims=True)                    # (tq, 1)
    a = jnp.dot(p.astype(jnp.bfloat16), v_scr[...],
                preferred_element_type=jnp.float32)               # (tq, C)
    # Deferred normalization: divide the (tq, C) tile, not the (tq, HW) probs.
    a = a * pl.reciprocal(denom, approx=True)
    y = jnp.dot(a.astype(jnp.bfloat16), wp_ref[...],
                preferred_element_type=jnp.float32) + bp_ref[...]
    x_t = x_ref[0, pl.ds(row0, tq), :]                            # residual slice (f32)
    o_ref[0] = (x_t + y).astype(o_ref.dtype)


def _pick_tq(HW):
    for cand in (256, 128):
        if HW > cand and HW % cand == 0:
            return cand
    return HW


def _vmem_limit_bytes(HW, C, tq):
    f32, bf16 = 4, 2
    est = 0
    est += 2 * HW * C * f32                 # x block (double-buffered)
    est += 2 * tq * C * f32                 # out block (double-buffered)
    est += 2 * (3 * C * C + C * C) * bf16   # wqkv + wp
    est += 2 * C * C * f32                  # group-average matrix
    est += 3 * HW * C * bf16                # q/k/v scratch
    est += tq * HW * (f32 + bf16)           # score tile + bf16 probs
    est += 4 * HW * C * f32                 # transient intermediates headroom
    # Generous headroom; clamp to [32 MiB, 64 MiB] so the request is valid on v7x too.
    return int(min(max(2 * est, 32 << 20), 64 << 20))


def attn_block_forward_channels_last(params, x_bhwc, *, num_groups=32, eps=1e-6):
    """AttnBlock forward on channels-last input: (B, H, W, C) -> (B, H, W, C)."""
    B, H, W, C = x_bhwc.shape
    assert C % num_groups == 0, "GroupNorm requires channels divisible by num_groups"
    HW = H * W
    tq = _pick_tq(HW)
    x = x_bhwc.reshape(B, HW, C).astype(jnp.float32)

    # Fold the attention scale into the q projection; fuse q/k/v; bf16 weights.
    scale = float(C) ** (-0.5)
    wqkv = jnp.concatenate(
        [params["wq"] * scale, params["wk"], params["wv"]], axis=1).astype(jnp.bfloat16)
    bqkv = jnp.concatenate(
        [params["bq"] * scale, params["bk"], params["bv"]], axis=1).astype(jnp.float32)
    wp = params["wp"].astype(jnp.bfloat16)
    bp = params["bp"].astype(jnp.float32)
    gamma = params["gamma"].astype(jnp.float32)
    beta = params["beta"].astype(jnp.float32)

    # Precomputed block-diagonal group-averaging matrix (includes 1/(HW*gs)).
    gs = C // num_groups
    gids = jnp.arange(C, dtype=jnp.int32) // gs
    grp = (gids[:, None] == gids[None, :]).astype(jnp.float32) * (1.0 / float(HW * gs))

    kernel = functools.partial(_attn_block_kernel, eps=float(eps), tq=tq)
    const2 = lambda b, qt: (0, 0)

    out = pl.pallas_call(
        kernel,
        out_shape=jax.ShapeDtypeStruct((B, HW, C), jnp.float32),
        grid_spec=pltpu.PrefetchScalarGridSpec(
            num_scalar_prefetch=0,
            grid=(B, HW // tq),
            in_specs=[
                pl.BlockSpec((1, HW, C), lambda b, qt: (b, 0, 0)),   # x (full per batch)
                pl.BlockSpec((1, C), const2),                        # gamma
                pl.BlockSpec((1, C), const2),                        # beta
                pl.BlockSpec((C, C), const2),                        # group-avg matrix
                pl.BlockSpec((C, 3 * C), const2),                    # fused wqkv (bf16)
                pl.BlockSpec((1, 3 * C), const2),                    # fused bqkv
                pl.BlockSpec((C, C), const2),                        # wp (bf16)
                pl.BlockSpec((1, C), const2),                        # bp
            ],
            out_specs=pl.BlockSpec((1, tq, C), lambda b, qt: (b, qt, 0)),
            scratch_shapes=[
                pltpu.VMEM((HW, C), jnp.bfloat16),                   # q
                pltpu.VMEM((HW, C), jnp.bfloat16),                   # k
                pltpu.VMEM((HW, C), jnp.bfloat16),                   # v
            ],
        ),
        compiler_params=pltpu.CompilerParams(
            dimension_semantics=("parallel", "arbitrary"),
            vmem_limit_bytes=_vmem_limit_bytes(HW, C, tq),
        ),
    )(x, gamma, beta, grp, wqkv, bqkv, wp, bp)

    return out.reshape(B, H, W, C)


def attn_block_forward(params, x_nchw, *, num_groups=32, eps=1e-6):
    """PyTorch-interface wrapper: (B, C, H, W) -> (B, C, H, W).
    Prefer attn_block_forward_channels_last in a channels-last model to avoid the
    HBM round-trip transposes XLA inserts here."""
    x_bhwc = jnp.transpose(x_nchw, (0, 2, 3, 1))
    out = attn_block_forward_channels_last(params, x_bhwc,
                                           num_groups=num_groups, eps=eps)
    return jnp.transpose(out, (0, 3, 1, 2))


# ----------------------------------------------------------------------------
# Deterministic parameter init (matches PyTorch Conv2d / GroupNorm default dists)
# ----------------------------------------------------------------------------
def init_attn_block_params(key, in_channels):
    C = in_channels
    bound = 1.0 / (C ** 0.5)
    ks = jax.random.split(key, 8)

    def wmat(k):   # stored as (Cin, Cout) == torch_conv.weight[:, :, 0, 0].T
        return jax.random.uniform(k, (C, C), jnp.float32, -bound, bound)

    def bvec(k):
        return jax.random.uniform(k, (1, C), jnp.float32, -bound, bound)

    return {
        "gamma": jnp.ones((1, C), jnp.float32),
        "beta": jnp.zeros((1, C), jnp.float32),
        "wq": wmat(ks[0]), "bq": bvec(ks[1]),
        "wk": wmat(ks[2]), "bk": bvec(ks[3]),
        "wv": wmat(ks[4]), "bv": bvec(ks[5]),
        "wp": wmat(ks[6]), "bp": bvec(ks[7]),
    }


# ----------------------------------------------------------------------------
# Pure-JAX f32 reference (sanity check for the bf16-MXU Pallas kernel)
# ----------------------------------------------------------------------------
def attn_block_reference(params, x_nchw, *, num_groups=32, eps=1e-6):
    B, C, H, W = x_nchw.shape
    HW = H * W
    x = jnp.transpose(x_nchw, (0, 2, 3, 1)).reshape(B, HW, C).astype(jnp.float32)
    gs = C // num_groups
    xg = x.reshape(B, HW, num_groups, gs)
    mean = xg.mean(axis=(1, 3), keepdims=True)
    var = ((xg - mean) ** 2).mean(axis=(1, 3), keepdims=True)
    h = ((xg - mean) / jnp.sqrt(var + eps)).reshape(B, HW, C)
    h = h * params["gamma"].reshape(1, 1, C) + params["beta"].reshape(1, 1, C)
    hp = jax.lax.Precision.HIGHEST
    q = jnp.einsum("bnc,cd->bnd", h, params["wq"], precision=hp) + params["bq"]
    k = jnp.einsum("bnc,cd->bnd", h, params["wk"], precision=hp) + params["bk"]
    v = jnp.einsum("bnc,cd->bnd", h, params["wv"], precision=hp) + params["bv"]
    s = jnp.einsum("bic,bjc->bij", q, k, precision=hp) * (float(C) ** (-0.5))
    p = jax.nn.softmax(s, axis=-1)
    a = jnp.einsum("bij,bjc->bic", p, v, precision=hp)
    y = jnp.einsum("bnc,cd->bnd", a, params["wp"], precision=hp) + params["bp"]
    out = x + y
    return out.reshape(B, H, W, C).transpose(0, 3, 1, 2)


if __name__ == "__main__":
    key = jax.random.PRNGKey(0)
    in_channels = 64            # must be divisible by 32 (GroupNorm with 32 groups)
    kp, kx = jax.random.split(key)
    params = init_attn_block_params(kp, in_channels)

    # small example: batch=2, channels=64, 16x16 spatial (HW=256 -> 2 query tiles)
    x = jax.random.normal(kx, (2, in_channels, 16, 16), jnp.float32)

    out = jax.jit(attn_block_forward)(params, x)
    out = jax.block_until_ready(out)
    assert out.shape == x.shape
    assert bool(jnp.all(jnp.isfinite(out)))

    ref = jax.jit(attn_block_reference)(params, x)
    ref = jax.block_until_ready(ref)
    max_err = float(jnp.max(jnp.abs(out - ref)))
    assert max_err < 5e-2, f"kernel/reference mismatch (bf16 MXU): max abs err = {max_err}"

    print("KERNEL_OK")
</pallas_src>

<mosaic_0001>
module attributes {stable_mosaic.version = 11 : i64} {
  func.func @_attn_block_kernel(%arg0: i32, %arg1: i32, %arg2: memref<1x256x64xf32, #tpu.memory_space<vmem>>, %arg3: memref<1x64xf32, #tpu.memory_space<vmem>>, %arg4: memref<1x64xf32, #tpu.memory_space<vmem>>, %arg5: memref<64x64xf32, #tpu.memory_space<vmem>>, %arg6: memref<64x192xbf16, #tpu.memory_space<vmem>>, %arg7: memref<1x192xf32, #tpu.memory_space<vmem>>, %arg8: memref<64x64xbf16, #tpu.memory_space<vmem>>, %arg9: memref<1x64xf32, #tpu.memory_space<vmem>>, %arg10: memref<1x128x64xf32, #tpu.memory_space<vmem>>, %arg11: memref<256x64xbf16, #tpu.memory_space<vmem>>, %arg12: memref<256x64xbf16, #tpu.memory_space<vmem>>, %arg13: memref<256x64xbf16, #tpu.memory_space<vmem>>) attributes {dimension_semantics = [#tpu.dimension_semantics<parallel>, #tpu.dimension_semantics<arbitrary>], iteration_bounds = array<i64: 2, 2>, scalar_prefetch = 0 : i64, scratch_operands = 3 : i64, tpu.core_type = #tpu.core_type<tc>, window_params = [{transform_indices = @transform_0, window_bounds = array<i64: 1, 256, 64>}, {pipeline_mode = #tpu.pipeline_mode<synchronous>, transform_indices = @transform_1, window_bounds = array<i64: 1, 64>}, {pipeline_mode = #tpu.pipeline_mode<synchronous>, transform_indices = @transform_2, window_bounds = array<i64: 1, 64>}, {pipeline_mode = #tpu.pipeline_mode<synchronous>, transform_indices = @transform_3, window_bounds = array<i64: 64, 64>}, {pipeline_mode = #tpu.pipeline_mode<synchronous>, transform_indices = @transform_4, window_bounds = array<i64: 64, 192>}, {pipeline_mode = #tpu.pipeline_mode<synchronous>, transform_indices = @transform_5, window_bounds = array<i64: 1, 192>}, {pipeline_mode = #tpu.pipeline_mode<synchronous>, transform_indices = @transform_6, window_bounds = array<i64: 64, 64>}, {pipeline_mode = #tpu.pipeline_mode<synchronous>, transform_indices = @transform_7, window_bounds = array<i64: 1, 64>}, {transform_indices = @transform_8, window_bounds = array<i64: 1, 128, 64>}]} {
    %c0_i32 = arith.constant 0 : i32
    %0 = arith.cmpi eq, %arg1, %c0_i32 : i32
    %1 = arith.extui %0 : i1 to i32
    %c0_i32_0 = arith.constant 0 : i32
    %2 = arith.cmpi ne, %1, %c0_i32_0 : i32
    scf.if %2 {
      %c0_18 = arith.constant 0 : index
      %c0_19 = arith.constant 0 : index
      %c0_20 = arith.constant 0 : index
      %35 = vector.load %arg2[%c0_18, %c0_19, %c0_20] : memref<1x256x64xf32, #tpu.memory_space<vmem>>, vector<1x256x64xf32>
      %36 = vector.shape_cast %35 : vector<1x256x64xf32> to vector<256x64xf32>
      %cst_21 = arith.constant 1.000000e+00 : f32
      %37 = vector.broadcast %cst_21 : f32 to vector<1x256xf32>
      %cst_22 = arith.constant dense<0.000000e+00> : vector<1x64xf32>
      %38 = tpu.matmul %37, %36, %cst_22 {dimension_numbers = #tpu.dot_dimension_numbers<[1], [0], [0], [1], [0, 0, 1, 1], [], []>} : vector<1x256xf32>, vector<256x64xf32>, vector<1x64xf32> -> vector<1x64xf32>
      %39 = arith.mulf %36, %36 : vector<256x64xf32>
      %cst_23 = arith.constant dense<0.000000e+00> : vector<1x64xf32>
      %40 = tpu.matmul %37, %39, %cst_23 {dimension_numbers = #tpu.dot_dimension_numbers<[1], [0], [0], [1], [0, 0, 1, 1], [], []>} : vector<1x256xf32>, vector<256x64xf32>, vector<1x64xf32> -> vector<1x64xf32>
      %c0_24 = arith.constant 0 : index
      %c0_25 = arith.constant 0 : index
      %41 = vector.load %arg5[%c0_24, %c0_25] : memref<64x64xf32, #tpu.memory_space<vmem>>, vector<64x64xf32>
      %cst_26 = arith.constant dense<0.000000e+00> : vector<1x64xf32>
      %42 = tpu.matmul %38, %41, %cst_26 {dimension_numbers = #tpu.dot_dimension_numbers<[1], [0], [0], [1], [0, 0, 1, 1], [], []>} : vector<1x64xf32>, vector<64x64xf32>, vector<1x64xf32> -> vector<1x64xf32>
      %c0_27 = arith.constant 0 : index
      %c0_28 = arith.constant 0 : index
      %43 = vector.load %arg5[%c0_27, %c0_28] : memref<64x64xf32, #tpu.memory_space<vmem>>, vector<64x64xf32>
      %cst_29 = arith.constant dense<0.000000e+00> : vector<1x64xf32>
      %44 = tpu.matmul %40, %43, %cst_29 {dimension_numbers = #tpu.dot_dimension_numbers<[1], [0], [0], [1], [0, 0, 1, 1], [], []>} : vector<1x64xf32>, vector<64x64xf32>, vector<1x64xf32> -> vector<1x64xf32>
      %45 = arith.mulf %42, %42 : vector<1x64xf32>
      %46 = arith.subf %44, %45 : vector<1x64xf32>
      %cst_30 = arith.constant 9.99999997E-7 : f32
      %47 = vector.broadcast %cst_30 : f32 to vector<1x64xf32>
      %48 = arith.addf %46, %47 : vector<1x64xf32>
      %49 = math.rsqrt %48 : vector<1x64xf32>
      %50 = vector.broadcast %42 : vector<1x64xf32> to vector<256x64xf32>
      %51 = arith.subf %36, %50 : vector<256x64xf32>
      %c0_31 = arith.constant 0 : index
      %c0_32 = arith.constant 0 : index
      %52 = vector.load %arg3[%c0_31, %c0_32] : memref<1x64xf32, #tpu.memory_space<vmem>>, vector<1x64xf32>
      %53 = arith.mulf %49, %52 : vector<1x64xf32>
      %54 = vector.broadcast %53 : vector<1x64xf32> to vector<256x64xf32>
      %55 = arith.mulf %51, %54 : vector<256x64xf32>
      %c0_33 = arith.constant 0 : index
      %c0_34 = arith.constant 0 : index
      %56 = vector.load %arg4[%c0_33, %c0_34] : memref<1x64xf32, #tpu.memory_space<vmem>>, vector<1x64xf32>
      %57 = vector.broadcast %56 : vector<1x64xf32> to vector<256x64xf32>
      %58 = arith.addf %55, %57 : vector<256x64xf32>
      %59 = arith.truncf %58 : vector<256x64xf32> to vector<256x64xbf16>
      %c0_35 = arith.constant 0 : index
      %c0_36 = arith.constant 0 : index
      %60 = vector.load %arg6[%c0_35, %c0_36] : memref<64x192xbf16, #tpu.memory_space<vmem>>, vector<64x192xbf16>
      %cst_37 = arith.constant dense<0.000000e+00> : vector<256x192xf32>
      %61 = tpu.matmul %59, %60, %cst_37 {dimension_numbers = #tpu.dot_dimension_numbers<[1], [0], [0], [1], [0, 0, 1, 1], [], []>} : vector<256x64xbf16>, vector<64x192xbf16>, vector<256x192xf32> -> vector<256x192xf32>
      %c0_38 = arith.constant 0 : index
      %c0_39 = arith.constant 0 : index
      %62 = vector.load %arg7[%c0_38, %c0_39] : memref<1x192xf32, #tpu.memory_space<vmem>>, vector<1x192xf32>
      %63 = vector.broadcast %62 : vector<1x192xf32> to vector<256x192xf32>
      %64 = arith.addf %61, %63 : vector<256x192xf32>
      %65 = vector.extract_strided_slice %64 {offsets = [0, 0], sizes = [256, 64], strides = [1, 1]} : vector<256x192xf32> to vector<256x64xf32>
      %66 = arith.truncf %65 : vector<256x64xf32> to vector<256x64xbf16>
      %c0_40 = arith.constant 0 : index
      %c0_41 = arith.constant 0 : index
      %67 = vector.load %arg11[%c0_40, %c0_41] : memref<256x64xbf16, #tpu.memory_space<vmem>>, vector<256x64xbf16>
      tpu.vector_store %arg11[%c0_40, %c0_41], %66 {strides = array<i32>} : memref<256x64xbf16, #tpu.memory_space<vmem>>, vector<256x64xbf16>,
      %68 = vector.extract_strided_slice %64 {offsets = [0, 64], sizes = [256, 64], strides = [1, 1]} : vector<256x192xf32> to vector<256x64xf32>
      %69 = arith.truncf %68 : vector<256x64xf32> to vector<256x64xbf16>
      %c0_42 = arith.constant 0 : index
      %c0_43 = arith.constant 0 : index
      %70 = vector.load %arg12[%c0_42, %c0_43] : memref<256x64xbf16, #tpu.memory_space<vmem>>, vector<256x64xbf16>
      tpu.vector_store %arg12[%c0_42, %c0_43], %69 {strides = array<i32>} : memref<256x64xbf16, #tpu.memory_space<vmem>>, vector<256x64xbf16>,
      %71 = vector.extract_strided_slice %64 {offsets = [0, 128], sizes = [256, 64], strides = [1, 1]} : vector<256x192xf32> to vector<256x64xf32>
      %72 = arith.truncf %71 : vector<256x64xf32> to vector<256x64xbf16>
      %c0_44 = arith.constant 0 : index
      %c0_45 = arith.constant 0 : index
      %73 = vector.load %arg13[%c0_44, %c0_45] : memref<256x64xbf16, #tpu.memory_space<vmem>>, vector<256x64xbf16>
      tpu.vector_store %arg13[%c0_44, %c0_45], %72 {strides = array<i32>} : memref<256x64xbf16, #tpu.memory_space<vmem>>, vector<256x64xbf16>,
    } else {
    }
    %c128_i32 = arith.constant 128 : i32
    %3 = arith.muli %arg1, %c128_i32 : i32
    %4 = tpu.assume_multiple %3, 128 : i32
    %5 = arith.index_cast %4 : i32 to index
    %c0 = arith.constant 0 : index
    %6 = vector.load %arg11[%5, %c0] : memref<256x64xbf16, #tpu.memory_space<vmem>>, vector<128x64xbf16>
    %c0_1 = arith.constant 0 : index
    %c0_2 = arith.constant 0 : index
    %7 = vector.load %arg12[%c0_1, %c0_2] : memref<256x64xbf16, #tpu.memory_space<vmem>>, vector<256x64xbf16>
    %cst = arith.constant dense<0.000000e+00> : vector<128x256xf32>
    %8 = tpu.matmul %6, %7, %cst {dimension_numbers = #tpu.dot_dimension_numbers<[1], [1], [0], [0], [0, 0, 1, 0], [], []>} : vector<128x64xbf16>, vector<256x64xbf16>, vector<128x256xf32> -> vector<128x256xf32>
    %cst_3 = arith.constant dense<0xFF800000> : vector<128xf32>
    %9 = vector.multi_reduction <maximumf>, %8, %cst_3 [1] : vector<128x256xf32> to vector<128xf32>
    %10 = vector.shape_cast %9 : vector<128xf32> to vector<128x1xf32>
    %11 = vector.broadcast %10 : vector<128x1xf32> to vector<128x256xf32>
    %12 = arith.subf %8, %11 : vector<128x256xf32>
    %13 = math.exp %12 : vector<128x256xf32>
    %cst_4 = arith.constant dense<0.000000e+00> : vector<128xf32>
    %14 = vector.multi_reduction <add>, %13, %cst_4 [1] : vector<128x256xf32> to vector<128xf32>
    %15 = vector.shape_cast %14 : vector<128xf32> to vector<128x1xf32>
    %16 = arith.truncf %13 : vector<128x256xf32> to vector<128x256xbf16>
    %c0_5 = arith.constant 0 : index
    %c0_6 = arith.constant 0 : index
    %17 = vector.load %arg13[%c0_5, %c0_6] : memref<256x64xbf16, #tpu.memory_space<vmem>>, vector<256x64xbf16>
    %cst_7 = arith.constant dense<0.000000e+00> : vector<128x64xf32>
    %18 = tpu.matmul %16, %17, %cst_7 {dimension_numbers = #tpu.dot_dimension_numbers<[1], [0], [0], [1], [0, 0, 1, 1], [], []>} : vector<128x256xbf16>, vector<256x64xbf16>, vector<128x64xf32> -> vector<128x64xf32>
    %19 = tpu.reciprocal %15 {approx = true} : vector<128x1xf32> -> vector<128x1xf32>
    %20 = vector.broadcast %19 : vector<128x1xf32> to vector<128x64xf32>
    %21 = arith.mulf %18, %20 : vector<128x64xf32>
    %22 = arith.truncf %21 : vector<128x64xf32> to vector<128x64xbf16>
    %c0_8 = arith.constant 0 : index
    %c0_9 = arith.constant 0 : index
    %23 = vector.load %arg8[%c0_8, %c0_9] : memref<64x64xbf16, #tpu.memory_space<vmem>>, vector<64x64xbf16>
    %cst_10 = arith.constant dense<0.000000e+00> : vector<128x64xf32>
    %24 = tpu.matmul %22, %23, %cst_10 {dimension_numbers = #tpu.dot_dimension_numbers<[1], [0], [0], [1], [0, 0, 1, 1], [], []>} : vector<128x64xbf16>, vector<64x64xbf16>, vector<128x64xf32> -> vector<128x64xf32>
    %c0_11 = arith.constant 0 : index
    %c0_12 = arith.constant 0 : index
    %25 = vector.load %arg9[%c0_11, %c0_12] : memref<1x64xf32, #tpu.memory_space<vmem>>, vector<1x64xf32>
    %26 = vector.broadcast %25 : vector<1x64xf32> to vector<128x64xf32>
    %27 = arith.addf %24, %26 : vector<128x64xf32>
    %c0_13 = arith.constant 0 : index
    %28 = arith.index_cast %4 : i32 to index
    %c0_14 = arith.constant 0 : index
    %29 = vector.load %arg2[%c0_13, %28, %c0_14] : memref<1x256x64xf32, #tpu.memory_space<vmem>>, vector<1x128x64xf32>
    %30 = vector.shape_cast %29 : vector<1x128x64xf32> to vector<128x64xf32>
    %31 = arith.addf %30, %27 : vector<128x64xf32>
    %c0_15 = arith.constant 0 : index
    %c0_16 = arith.constant 0 : index
    %c0_17 = arith.constant 0 : index
    %32 = vector.load %arg10[%c0_15, %c0_16, %c0_17] : memref<1x128x64xf32, #tpu.memory_space<vmem>>, vector<1x128x64xf32>
    %33 = vector.shape_cast %32 : vector<1x128x64xf32> to vector<128x64xf32>
    %34 = vector.shape_cast %31 : vector<128x64xf32> to vector<1x128x64xf32>
    tpu.vector_store %arg10[%c0_15, %c0_16, %c0_17], %34 {strides = array<i32>} : memref<1x128x64xf32, #tpu.memory_space<vmem>>, vector<1x128x64xf32>,
    return
  }
  func.func @transform_0(%arg0: i32, %arg1: i32) -> (i32, i32, i32) {
    %c0_i32 = arith.constant 0 : i32
    %c0_i32_0 = arith.constant 0 : i32
    %c0_i32_1 = arith.constant 0 : i32
    return %arg0, %c0_i32, %c0_i32_0 : i32, i32, i32
  }
  func.func @transform_1(%arg0: i32, %arg1: i32) -> (i32, i32) {
    %c0_i32 = arith.constant 0 : i32
    %c0_i32_0 = arith.constant 0 : i32
    %c0_i32_1 = arith.constant 0 : i32
    return %c0_i32, %c0_i32_0 : i32, i32
  }
  func.func @transform_2(%arg0: i32, %arg1: i32) -> (i32, i32) {
    %c0_i32 = arith.constant 0 : i32
    %c0_i32_0 = arith.constant 0 : i32
    %c0_i32_1 = arith.constant 0 : i32
    return %c0_i32, %c0_i32_0 : i32, i32
  }
  func.func @transform_3(%arg0: i32, %arg1: i32) -> (i32, i32) {
    %c0_i32 = arith.constant 0 : i32
    %c0_i32_0 = arith.constant 0 : i32
    %c0_i32_1 = arith.constant 0 : i32
    return %c0_i32, %c0_i32_0 : i32, i32
  }
  func.func @transform_4(%arg0: i32, %arg1: i32) -> (i32, i32) {
    %c0_i32 = arith.constant 0 : i32
    %c0_i32_0 = arith.constant 0 : i32
    %c0_i32_1 = arith.constant 0 : i32
    return %c0_i32, %c0_i32_0 : i32, i32
  }
  func.func @transform_5(%arg0: i32, %arg1: i32) -> (i32, i32) {
    %c0_i32 = arith.constant 0 : i32
    %c0_i32_0 = arith.constant 0 : i32
    %c0_i32_1 = arith.constant 0 : i32
    return %c0_i32, %c0_i32_0 : i32, i32
  }
  func.func @transform_6(%arg0: i32, %arg1: i32) -> (i32, i32) {
    %c0_i32 = arith.constant 0 : i32
    %c0_i32_0 = arith.constant 0 : i32
    %c0_i32_1 = arith.constant 0 : i32
    return %c0_i32, %c0_i32_0 : i32, i32
  }
  func.func @transform_7(%arg0: i32, %arg1: i32) -> (i32, i32) {
    %c0_i32 = arith.constant 0 : i32
    %c0_i32_0 = arith.constant 0 : i32
    %c0_i32_1 = arith.constant 0 : i32
    return %c0_i32, %c0_i32_0 : i32, i32
  }
  func.func @transform_8(%arg0: i32, %arg1: i32) -> (i32, i32, i32) {
    %c0_i32 = arith.constant 0 : i32
    %c0_i32_0 = arith.constant 0 : i32
    return %arg0, %arg1, %c0_i32 : i32, i32, i32
  }
}

</mosaic_0001>

<llo_original>
// kernel: attn_block_forward.1
$region0: #{attn_block_forward.1}
  #allocation0 [shape = 'u32[]', space=smem, size = 0x4, offset = 0x4, fixed_abs, tag = 'smem constant byte address 0x4 - core index']
  #allocation1 [shape = 'u32[144,128]{1,0:T(1,128)}', space=vmem, size = 0x12000, scoped, tag = 'internal scratch']
  #allocation2 [shape = 'bf16[256,64]{1,0:T(16,128)(2,1)}', space=vmem, size = 0x10000, scoped, tag = 'scratch operand']
  #allocation3 [shape = 'bf16[256,64]{1,0:T(16,128)(2,1)}', space=vmem, size = 0x10000, scoped, tag = 'scratch operand']
  #allocation4 [shape = 'bf16[256,64]{1,0:T(16,128)(2,1)}', space=vmem, size = 0x10000, scoped, tag = 'scratch operand']
  %s0 = inlined_call_operand.vmem [shape: f32[2,256,64], index: 0, kind: input, shape index: {}]
  %s1 = inlined_call_operand.vmem [shape: f32[1,64], index: 1, kind: input, shape index: {}]
  %s2 = inlined_call_operand.vmem [shape: f32[1,64], index: 2, kind: input, shape index: {}]
  %s3 = inlined_call_operand.vmem [shape: f32[64,64], index: 3, kind: input, shape index: {}]
  %s4 = inlined_call_operand.vmem [shape: bf16[64,192], index: 4, kind: input, shape index: {}]
  %s5 = inlined_call_operand.vmem [shape: f32[1,192], index: 5, kind: input, shape index: {}]
  %s6 = inlined_call_operand.vmem [shape: bf16[64,64], index: 6, kind: input, shape index: {}]
  %s7 = inlined_call_operand.vmem [shape: f32[1,64], index: 7, kind: input, shape index: {}]
  %s8 = inlined_call_operand.hbm [shape: f32[2,256,64], index: 8, kind: output, shape index: {}]
  %s9 = sld [smem:[#allocation0]]
  $region69: #{attn_block_forward.1} parent=0
    _
  %s11 = ssub.s32 1, %s9
  %s12 = scalar_select 0, %s11, %s9
  $region1: #{attn_block_forward.1} parent=0
    #allocation5 [shape = 'u8[131072]{0}', space=vmem, size = 0x20000, scoped, tag = 'output window, operand 0']
    #allocation6 [shape = 's32[2]{0}', space=sflag, size = 0x8, scoped, tag = 'scoped memory for attn_block_forward.1']
    %13 = vsyncpa [#allocation6], 0
    %s14 = scalar_lea.sflag [#allocation6], 1
    %15 = vsyncpa %s14, 0
    loop: start=0, step=1, limit=6
    $region2: #{attn_block_forward.1} parent=1 // loop_pre_header
      _
    $region3: #{attn_block_forward.1} parent=1 // loop_header
      %s17 = sphi 0, %s21
      %p18 = scmp.ge.s32.totalorder %s17, 6
      %s24 = sphi 0, %s36
      %s25 = sphi 0, %s32
      %s26 = sphi 0, %s24
      %s27 = sphi 0, %s25
      %s28 = sphi 0, %s26
      %s29 = sphi 0, %s27
      %s39 = sphi 0, %s41
      %s42 = sphi 0, %s39
      %s43 = sphi 0, %s42
      %s59 = sphi 0, %s43
      %s63 = sphi 0, %s63
      %s65 = sphi 0, %s63
      %s66 = sphi 0, %s65
      %s80 = sphi 0, %s66
      %s84 = sphi 0, %s84
      %s86 = sphi 0, %s84
      %s87 = sphi 0, %s86
      %s101 = sphi 0, %s87
      %s105 = sphi 0, %s105
      %s107 = sphi 0, %s105
      %s108 = sphi 0, %s107
      %s122 = sphi 0, %s108
      %s126 = sphi 0, %s126
      %s128 = sphi 0, %s126
      %s129 = sphi 0, %s128
      %s143 = sphi 0, %s129
      %s147 = sphi 0, %s147
      %s149 = sphi 0, %s147
      %s150 = sphi 0, %s149
      %s164 = sphi 0, %s150
      %s168 = sphi 0, %s168
      %s170 = sphi 0, %s168
      %s171 = sphi 0, %s170
      %s185 = sphi 0, %s171
      %s189 = sphi 0, %s189
      %s191 = sphi 0, %s189
      %s192 = sphi 0, %s191
      %s206 = sphi 0, %s192
      %s214 = sphi 0, %s216
      %s217 = sphi 0, %s214
      %s218 = sphi 0, %s217
      %s234 = sphi 0, %s218
    $region4: #{attn_block_forward.1} parent=1 // loop_header_branch
      %20 = sbr.rel (%p18) target = $region8
    $region5: #{attn_block_forward.1} parent=1 // loop_body
      %s22 = ssub.s32 %s17, 1
      %s23 = ssub.s32 %s17, 2
      %s30 = sadd.s32 1, %s25
      %p31 = scmp.ge.s32.totalorder %s30, 2
      %s32 = scalar_select %p31, 0, %s30
      %s33 = sadd.s32 1, %s24
      %s34 = scalar_select %p31, %s33, %s24
      %p35 = scmp.ge.s32.totalorder %s34, 2
      %s36 = scalar_select %p35, 0, %s34
      %s37 = ssub.s32 %s24, %s36
      %p38 = scmp.eq.s32.totalorder %s37, 0
      %s40 = sadd.s32 %s39, 1
      %s41 = scalar_select %p38, %s39, %s40
      %p44 = pneg %p38
      %p45 = scmp.eq.s32.totalorder %s17, 3
      %p46 = por %p44, %p45
      %p47 = scmp.ne.s32.totalorder %s39, %s42
      %p48 = scmp.eq.s32.totalorder %s17, 0
      %p49 = por %p47, %p48
      %p50 = scmp.ne.s32.totalorder %s39, %s42
      %p51 = scmp.eq.s32.totalorder %s22, 3
      %p52 = por %p50, %p51
      %p53 = scmp.ne.s32.totalorder %s42, %s43
      %p54 = scmp.eq.s32.totalorder %s22, 0
      %p55 = por %p53, %p54
      %p56 = scmp.ne.s32.totalorder %s42, %s43
      %p57 = scmp.eq.s32.totalorder %s23, 3
      %p58 = por %p56, %p57
      %p60 = scmp.ne.s32.totalorder %s43, %s59
      %p61 = scmp.eq.s32.totalorder %s23, 0
      %p62 = por %p60, %p61
      %s64 = sadd.s32 %s63, 1
      %p67 = scmp.eq.s32.totalorder %s17, 3
      %p68 = scmp.ne.s32.totalorder %s63, %s65
      %p69 = scmp.eq.s32.totalorder %s17, 0
      %p70 = por %p68, %p69
      %p71 = scmp.ne.s32.totalorder %s63, %s65
      %p72 = scmp.eq.s32.totalorder %s22, 3
      %p73 = por %p71, %p72
      %p74 = scmp.ne.s32.totalorder %s65, %s66
      %p75 = scmp.eq.s32.totalorder %s22, 0
      %p76 = por %p74, %p75
      %p77 = scmp.ne.s32.totalorder %s65, %s66
      %p78 = scmp.eq.s32.totalorder %s23, 3
      %p79 = por %p77, %p78
      %p81 = scmp.ne.s32.totalorder %s66, %s80
      %p82 = scmp.eq.s32.totalorder %s23, 0
      %p83 = por %p81, %p82
      %s85 = sadd.s32 %s84, 1
      %p88 = scmp.eq.s32.totalorder %s17, 3
      %p89 = scmp.ne.s32.totalorder %s84, %s86
      %p90 = scmp.eq.s32.totalorder %s17, 0
      %p91 = por %p89, %p90
      %p92 = scmp.ne.s32.totalorder %s84, %s86
      %p93 = scmp.eq.s32.totalorder %s22, 3
      %p94 = por %p92, %p93
      %p95 = scmp.ne.s32.totalorder %s86, %s87
      %p96 = scmp.eq.s32.totalorder %s22, 0
      %p97 = por %p95, %p96
      %p98 = scmp.ne.s32.totalorder %s86, %s87
      %p99 = scmp.eq.s32.totalorder %s23, 3
      %p100 = por %p98, %p99
      %p102 = scmp.ne.s32.totalorder %s87, %s101
      %p103 = scmp.eq.s32.totalorder %s23, 0
      %p104 = por %p102, %p103
      %s106 = sadd.s32 %s105, 1
      %p109 = scmp.eq.s32.totalorder %s17, 3
      %p110 = scmp.ne.s32.totalorder %s105, %s107
      %p111 = scmp.eq.s32.totalorder %s17, 0
      %p112 = por %p110, %p111
      %p113 = scmp.ne.s32.totalorder %s105, %s107
      %p114 = scmp.eq.s32.totalorder %s22, 3
      %p115 = por %p113, %p114
      %p116 = scmp.ne.s32.totalorder %s107, %s108
      %p117 = scmp.eq.s32.totalorder %s22, 0
      %p118 = por %p116, %p117
      %p119 = scmp.ne.s32.totalorder %s107, %s108
      %p120 = scmp.eq.s32.totalorder %s23, 3
      %p121 = por %p119, %p120
      %p123 = scmp.ne.s32.totalorder %s108, %s122
      %p124 = scmp.eq.s32.totalorder %s23, 0
      %p125 = por %p123, %p124
      %s127 = sadd.s32 %s126, 1
      %p130 = scmp.eq.s32.totalorder %s17, 3
      %p131 = scmp.ne.s32.totalorder %s126, %s128
      %p132 = scmp.eq.s32.totalorder %s17, 0
      %p133 = por %p131, %p132
      %p134 = scmp.ne.s32.totalorder %s126, %s128
      %p135 = scmp.eq.s32.totalorder %s22, 3
      %p136 = por %p134, %p135
      %p137 = scmp.ne.s32.totalorder %s128, %s129
      %p138 = scmp.eq.s32.totalorder %s22, 0
      %p139 = por %p137, %p138
      %p140 = scmp.ne.s32.totalorder %s128, %s129
      %p141 = scmp.eq.s32.totalorder %s23, 3
      %p142 = por %p140, %p141
      %p144 = scmp.ne.s32.totalorder %s129, %s143
      %p145 = scmp.eq.s32.totalorder %s23, 0
      %p146 = por %p144, %p145
      %s148 = sadd.s32 %s147, 1
      %p151 = scmp.eq.s32.totalorder %s17, 3
      %p152 = scmp.ne.s32.totalorder %s147, %s149
      %p153 = scmp.eq.s32.totalorder %s17, 0
      %p154 = por %p152, %p153
      %p155 = scmp.ne.s32.totalorder %s147, %s149
      %p156 = scmp.eq.s32.totalorder %s22, 3
      %p157 = por %p155, %p156
      %p158 = scmp.ne.s32.totalorder %s149, %s150
      %p159 = scmp.eq.s32.totalorder %s22, 0
      %p160 = por %p158, %p159
      %p161 = scmp.ne.s32.totalorder %s149, %s150
      %p162 = scmp.eq.s32.totalorder %s23, 3
      %p163 = por %p161, %p162
      %p165 = scmp.ne.s32.totalorder %s150, %s164
      %p166 = scmp.eq.s32.totalorder %s23, 0
      %p167 = por %p165, %p166
      %s169 = sadd.s32 %s168, 1
      %p172 = scmp.eq.s32.totalorder %s17, 3
      %p173 = scmp.ne.s32.totalorder %s168, %s170
      %p174 = scmp.eq.s32.totalorder %s17, 0
      %p175 = por %p173, %p174
      %p176 = scmp.ne.s32.totalorder %s168, %s170
      %p177 = scmp.eq.s32.totalorder %s22, 3
      %p178 = por %p176, %p177
      %p179 = scmp.ne.s32.totalorder %s170, %s171
      %p180 = scmp.eq.s32.totalorder %s22, 0
      %p181 = por %p179, %p180
      %p182 = scmp.ne.s32.totalorder %s170, %s171
      %p183 = scmp.eq.s32.totalorder %s23, 3
      %p184 = por %p182, %p183
      %p186 = scmp.ne.s32.totalorder %s171, %s185
      %p187 = scmp.eq.s32.totalorder %s23, 0
      %p188 = por %p186, %p187
      %s190 = sadd.s32 %s189, 1
      %p193 = scmp.eq.s32.totalorder %s17, 3
      %p194 = scmp.ne.s32.totalorder %s189, %s191
      %p195 = scmp.eq.s32.totalorder %s17, 0
      %p196 = por %p194, %p195
      %p197 = scmp.ne.s32.totalorder %s189, %s191
      %p198 = scmp.eq.s32.totalorder %s22, 3
      %p199 = por %p197, %p198
      %p200 = scmp.ne.s32.totalorder %s191, %s192
      %p201 = scmp.eq.s32.totalorder %s22, 0
      %p202 = por %p200, %p201
      %p203 = scmp.ne.s32.totalorder %s191, %s192
      %p204 = scmp.eq.s32.totalorder %s23, 3
      %p205 = por %p203, %p204
      %p207 = scmp.ne.s32.totalorder %s192, %s206
      %p208 = scmp.eq.s32.totalorder %s23, 0
      %p209 = por %p207, %p208
      %s210 = ssub.s32 %s24, %s36
      %s211 = ssub.s32 %s25, %s32
      %s212 = sor.u32 %s210, %s211
      %p213 = scmp.eq.s32.totalorder %s212, 0
      %s215 = sadd.s32 %s214, 1
      %s216 = scalar_select %p213, %s214, %s215
      %p219 = pneg %p213
      %p220 = scmp.eq.s32.totalorder %s17, 3
      %p221 = por %p219, %p220
      %p222 = scmp.ne.s32.totalorder %s214, %s217
      %p223 = scmp.eq.s32.totalorder %s17, 0
      %p224 = por %p222, %p223
      %p225 = scmp.ne.s32.totalorder %s214, %s217
      %p226 = scmp.eq.s32.totalorder %s22, 3
      %p227 = por %p225, %p226
      %p228 = scmp.ne.s32.totalorder %s217, %s218
      %p229 = scmp.eq.s32.totalorder %s22, 0
      %p230 = por %p228, %p229
      %p231 = scmp.ne.s32.totalorder %s217, %s218
      %p232 = scmp.eq.s32.totalorder %s23, 3
      %p233 = por %p231, %p232
      %p235 = scmp.ne.s32.totalorder %s218, %s234
      %p236 = scmp.eq.s32.totalorder %s23, 0
      %p237 = por %p235, %p236
      %p238 = scmp.le.s32.totalorder 1, %s17
      %p239 = scmp.lt.s32.totalorder %s17, 5
      %p240 = pnand %p238, %p239
      %p241 = pneg %p240
      // Predicated region
      $region9: #{attn_block_forward.1} parent=5 // pred_check
        _
      $region10: #{attn_block_forward.1} parent=5 // pred_check_branch
        %243 = sbr.rel (%p240) target = $region12
      $region11: #{attn_block_forward.1} parent=5 // pred_region
        %s244 = ssub.s32 %s17, 1
        // Predicated region
        $region13: #{attn_block_forward.1} parent=11 // pred_check
          %p245 = pneg %p76
        $region14: #{attn_block_forward.1} parent=11 // pred_check_branch
          %247 = sbr.rel (%p245) target = $region16
        $region15: #{attn_block_forward.1} parent=11 // pred_region
          _
        $region16: #{attn_block_forward.1} parent=11 // pred_fallthru
          _
        // Predicated region
        $region17: #{attn_block_forward.1} parent=11 // pred_check
          %p248 = pneg %p97
        $region18: #{attn_block_forward.1} parent=11 // pred_check_branch
          %250 = sbr.rel (%p248) target = $region20
        $region19: #{attn_block_forward.1} parent=11 // pred_region
          _
        $region20: #{attn_block_forward.1} parent=11 // pred_fallthru
          _
        // Predicated region
        $region21: #{attn_block_forward.1} parent=11 // pred_check
          %p251 = pneg %p118
        $region22: #{attn_block_forward.1} parent=11 // pred_check_branch
          %253 = sbr.rel (%p251) target = $region24
        $region23: #{attn_block_forward.1} parent=11 // pred_region
          _
        $region24: #{attn_block_forward.1} parent=11 // pred_fallthru
          _
        // Predicated region
        $region25: #{attn_block_forward.1} parent=11 // pred_check
          %p254 = pneg %p139
        $region26: #{attn_block_forward.1} parent=11 // pred_check_branch
          %256 = sbr.rel (%p254) target = $region28
        $region27: #{attn_block_forward.1} parent=11 // pred_region
          _
        $region28: #{attn_block_forward.1} parent=11 // pred_fallthru
          _
        // Predicated region
        $region29: #{attn_block_forward.1} parent=11 // pred_check
          %p257 = pneg %p160
        $region30: #{attn_block_forward.1} parent=11 // pred_check_branch
          %259 = sbr.rel (%p257) target = $region32
        $region31: #{attn_block_forward.1} parent=11 // pred_region
          _
        $region32: #{attn_block_forward.1} parent=11 // pred_fallthru
          _
        // Predicated region
        $region33: #{attn_block_forward.1} parent=11 // pred_check
          %p260 = pneg %p181
        $region34: #{attn_block_forward.1} parent=11 // pred_check_branch
          %262 = sbr.rel (%p260) target = $region36
        $region35: #{attn_block_forward.1} parent=11 // pred_region
          _
        $region36: #{attn_block_forward.1} parent=11 // pred_fallthru
          _
        // Predicated region
        $region37: #{attn_block_forward.1} parent=11 // pred_check
          %p263 = pneg %p202
        $region38: #{attn_block_forward.1} parent=11 // pred_check_branch
          %265 = sbr.rel (%p263) target = $region40
        $region39: #{attn_block_forward.1} parent=11 // pred_region
          _
        $region40: #{attn_block_forward.1} parent=11 // pred_fallthru
          _
      $region12: #{attn_block_forward.1} parent=5 // pred_fallthru
        _
      %p266 = scmp.lt.s32.totalorder %s17, 4
      // Predicated region
      $region41: #{attn_block_forward.1} parent=5 // pred_check
        %p267 = pneg %p266
      $region42: #{attn_block_forward.1} parent=5 // pred_check_branch
        %269 = sbr.rel (%p267) target = $region44
      $region43: #{attn_block_forward.1} parent=5 // pred_region
        // Predicated region
        $region45: #{attn_block_forward.1} parent=43 // pred_check
          %p270 = pneg %p49
        $region46: #{attn_block_forward.1} parent=43 // pred_check_branch
          %272 = sbr.rel (%p270) target = $region48
        $region47: #{attn_block_forward.1} parent=43 // pred_region
          %p273 = scmp.lt.s32.totalorder %s24, 1
          %s274 = scalar_select %p273, %s24, 1
          %s275 = smul.addr %s274, 32
          %s276 = smul.addr %s275, 8
          %s277 = scalar_lea.vmem %s0, %s276
        $region48: #{attn_block_forward.1} parent=43 // pred_fallthru
          _
      $region44: #{attn_block_forward.1} parent=5 // pred_fallthru
        _
      %p278 = scmp.le.s32.totalorder 1, %s17
      %p279 = scmp.lt.s32.totalorder %s17, 5
      %p280 = pnand %p278, %p279
      %p281 = pneg %p280
      // Predicated region
      $region49: #{attn_block_forward.1} parent=5 // pred_check
        _
      $region50: #{attn_block_forward.1} parent=5 // pred_check_branch
        %283 = sbr.rel (%p280) target = $region52
      $region51: #{attn_block_forward.1} parent=5 // pred_region
        %s284 = ssub.s32 %s17, 1
        %p285 = scmp.lt.s32.totalorder %s26, 1
        %s286 = scalar_select %p285, %s26, 1
        %s287 = smul.addr %s286, 32
        %s288 = smul.addr %s287, 8
        %s289 = scalar_lea.vmem %s0, %s288
        %p290 = pneg %p55
        %p291 = pneg %p52
        %p292 = pneg %p76
        %p293 = pneg %p73
        %p294 = pneg %p97
        %p295 = pneg %p94
        %p296 = pneg %p118
        %p297 = pneg %p115
        %p298 = pneg %p139
        %p299 = pneg %p136
        %p300 = pneg %p160
        %p301 = pneg %p157
        %p302 = pneg %p181
        %p303 = pneg %p178
        %p304 = pneg %p202
        %p305 = pneg %p199
        %p306 = pneg %p230
        %p307 = pneg %p227
        %s308 = sand.u32 %s217, 1
        %s309 = scalar_lea.sflag [#allocation6], %s308
        %s310 = sand.u32 %s217, 1
        %s311 = smul.addr %s310, 128
        %s312 = scalar_lea.vmem [#allocation5], %s311
        %p313 = scmp.lt.s32.totalorder %s26, 1
        %s314 = scalar_select %p313, %s26, 1
        %s315 = smul.addr %s314, 32
        %s316 = smul.addr %s315, 8
        %s317 = scalar_lea.vmem %s0, %s316
        %s318 = smul.u32 16, %s27
        %p320 = scmp.eq.s32.totalorder %s27, 0
        // Predicated region
        $region53: #{attn_block_forward.1} parent=51 // pred_check
          %p321 = pneg %p320
        $region54: #{attn_block_forward.1} parent=51 // pred_check_branch
          %323 = sbr.rel (%p321) target = $region56
        $region55: #{attn_block_forward.1} parent=51 // pred_region
          %v324 = vld [vmem:[%s317] sm:$0xff]
          %v325 = vld [vmem:[%s317 + $0x8] sm:$0xff]
          %v326 = vld [vmem:[%s317 + $0x10] sm:$0xff]
          %v327 = vld [vmem:[%s317 + $0x18] sm:$0xff]
          %v328 = vld [vmem:[%s317 + $0x20] sm:$0xff]
          %v329 = vld [vmem:[%s317 + $0x28] sm:$0xff]
          %v330 = vld [vmem:[%s317 + $0x30] sm:$0xff]
          %v331 = vld [vmem:[%s317 + $0x38] sm:$0xff]
          %v332 = vld [vmem:[%s317 + $0x40] sm:$0xff]
          %v333 = vld [vmem:[%s317 + $0x48] sm:$0xff]
          %v334 = vld [vmem:[%s317 + $0x50] sm:$0xff]
          %v335 = vld [vmem:[%s317 + $0x58] sm:$0xff]
          %v336 = vld [vmem:[%s317 + $0x60] sm:$0xff]
          %v337 = vld [vmem:[%s317 + $0x68] sm:$0xff]
          %v338 = vld [vmem:[%s317 + $0x70] sm:$0xff]
          %v339 = vld [vmem:[%s317 + $0x78] sm:$0xff]
          %v340 = vld [vmem:[%s317 + $0x80] sm:$0xff]
          %v341 = vld [vmem:[%s317 + $0x88] sm:$0xff]
          %v342 = vld [vmem:[%s317 + $0x90] sm:$0xff]
          %v343 = vld [vmem:[%s317 + $0x98] sm:$0xff]
          %v344 = vld [vmem:[%s317 + $0xa0] sm:$0xff]
          %v345 = vld [vmem:[%s317 + $0xa8] sm:$0xff]
          %v346 = vld [vmem:[%s317 + $0xb0] sm:$0xff]
          %v347 = vld [vmem:[%s317 + $0xb8] sm:$0xff]
          %v348 = vld [vmem:[%s317 + $0xc0] sm:$0xff]
          %v349 = vld [vmem:[%s317 + $0xc8] sm:$0xff]
          %v350 = vld [vmem:[%s317 + $0xd0] sm:$0xff]
          %v351 = vld [vmem:[%s317 + $0xd8] sm:$0xff]
          %v352 = vld [vmem:[%s317 + $0xe0] sm:$0xff]
          %v353 = vld [vmem:[%s317 + $0xe8] sm:$0xff]
          %v354 = vld [vmem:[%s317 + $0xf0] sm:$0xff]
          %v355 = vld [vmem:[%s317 + $0xf8] sm:$0xff]
          %356 = vmatprep.subr.mxu0 0.0
          %357 = vmatpush1.msra.mxu0 %v324
          %358 = vmatprep.subr.mxu0 0.0
          %359 = vmatpush1.msra.mxu0 %v325
          %360 = vmatprep.subr.mxu0 0.0
          %361 = vmatpush1.msra.mxu0 %v326
          %362 = vmatprep.subr.mxu0 0.0
          %363 = vmatpush1.msra.mxu0 %v327
          %364 = vmatprep.subr.mxu0 0.0
          %365 = vmatpush1.msra.mxu0 %v328
          %366 = vmatprep.subr.mxu0 0.0
          %367 = vmatpush1.msra.mxu0 %v329
          %368 = vmatprep.subr.mxu0 0.0
          %369 = vmatpush1.msra.mxu0 %v330
          %370 = vmatprep.subr.mxu0 0.0
          %371 = vmatpush1.msra.mxu0 %v331
          %372 = vmatprep.subr.mxu0 0.0
          %373 = vmatpush1.msra.mxu0 %v332
          %374 = vmatprep.subr.mxu0 0.0
          %375 = vmatpush1.msra.mxu0 %v333
          %376 = vmatprep.subr.mxu0 0.0
          %377 = vmatpush1.msra.mxu0 %v334
          %378 = vmatprep.subr.mxu0 0.0
          %379 = vmatpush1.msra.mxu0 %v335
          %380 = vmatprep.subr.mxu0 0.0
          %381 = vmatpush1.msra.mxu0 %v336
          %382 = vmatprep.subr.mxu0 0.0
          %383 = vmatpush1.msra.mxu0 %v337
          %384 = vmatprep.subr.mxu0 0.0
          %385 = vmatpush1.msra.mxu0 %v338
          %386 = vmatprep.subr.mxu0 0.0
          %387 = vmatpush1.msra.mxu0 %v339
          %388 = vmatprep.subr.mxu0 0.0
          %389 = vmatpush1.msra.mxu0 %v340
          %390 = vmatprep.subr.mxu0 0.0
          %391 = vmatpush1.msra.mxu0 %v341
          %392 = vmatprep.subr.mxu0 0.0
          %393 = vmatpush1.msra.mxu0 %v342
          %394 = vmatprep.subr.mxu0 0.0
          %395 = vmatpush1.msra.mxu0 %v343
          %396 = vmatprep.subr.mxu0 0.0
          %397 = vmatpush1.msra.mxu0 %v344
          %398 = vmatprep.subr.mxu0 0.0
          %399 = vmatpush1.msra.mxu0 %v345
          %400 = vmatprep.subr.mxu0 0.0
          %401 = vmatpush1.msra.mxu0 %v346
          %402 = vmatprep.subr.mxu0 0.0
          %403 = vmatpush1.msra.mxu0 %v347
          %404 = vmatprep.subr.mxu0 0.0
          %405 = vmatpush1.msra.mxu0 %v348
          %406 = vmatprep.subr.mxu0 0.0
          %407 = vmatpush1.msra.mxu0 %v349
          %408 = vmatprep.subr.mxu0 0.0
          %409 = vmatpush1.msra.mxu0 %v350
          %410 = vmatprep.subr.mxu0 0.0
          %411 = vmatpush1.msra.mxu0 %v351
          %412 = vmatprep.subr.mxu0 0.0
          %413 = vmatpush1.msra.mxu0 %v352
          %414 = vmatprep.subr.mxu0 0.0
          %415 = vmatpush1.msra.mxu0 %v353
          %416 = vmatprep.subr.mxu0 0.0
          %417 = vmatpush1.msra.mxu0 %v354
          %418 = vmatprep.subr.mxu0 0.0
          %419 = vmatpush1.msra.mxu0 %v355
          %420 = vmatprep.mubr.f32.mxu0 1.0
          %421 = vmatmul.mubr.f32.gmra.mrb[0].mxu0 1.0
          %v422 = vpop.f32.mrb[0].mxu0
          %v423 = vadd.f32 0.0, %v422
          %v424 = vpop.f32.mrb[0].mxu0
          %425 = vdwg.mxu0
          %v426 = vmul.f32 %v324, %v324
          %v427 = vmul.f32 %v325, %v325
          %v428 = vmul.f32 %v326, %v326
          %v429 = vmul.f32 %v327, %v327
          %v430 = vmul.f32 %v328, %v328
          %v431 = vmul.f32 %v329, %v329
          %v432 = vmul.f32 %v330, %v330
          %v433 = vmul.f32 %v331, %v331
          %v434 = vmul.f32 %v332, %v332
          %v435 = vmul.f32 %v333, %v333
          %v436 = vmul.f32 %v334, %v334
          %v437 = vmul.f32 %v335, %v335
          %v438 = vmul.f32 %v336, %v336
          %v439 = vmul.f32 %v337, %v337
          %v440 = vmul.f32 %v338, %v338
          %v441 = vmul.f32 %v339, %v339
          %v442 = vmul.f32 %v340, %v340
          %v443 = vmul.f32 %v341, %v341
          %v444 = vmul.f32 %v342, %v342
          %v445 = vmul.f32 %v343, %v343
          %v446 = vmul.f32 %v344, %v344
          %v447 = vmul.f32 %v345, %v345
          %v448 = vmul.f32 %v346, %v346
          %v449 = vmul.f32 %v347, %v347
          %v450 = vmul.f32 %v348, %v348
          %v451 = vmul.f32 %v349, %v349
          %v452 = vmul.f32 %v350, %v350
          %v453 = vmul.f32 %v351, %v351
          %v454 = vmul.f32 %v352, %v352
          %v455 = vmul.f32 %v353, %v353
          %v456 = vmul.f32 %v354, %v354
          %v457 = vmul.f32 %v355, %v355
          %458 = vmatprep.subr.mxu0 0.0
          %459 = vmatpush1.msra.mxu0 %v426
          %460 = vmatprep.subr.mxu0 0.0
          %461 = vmatpush1.msra.mxu0 %v427
          %462 = vmatprep.subr.mxu0 0.0
          %463 = vmatpush1.msra.mxu0 %v428
          %464 = vmatprep.subr.mxu0 0.0
          %465 = vmatpush1.msra.mxu0 %v429
          %466 = vmatprep.subr.mxu0 0.0
          %467 = vmatpush1.msra.mxu0 %v430
          %468 = vmatprep.subr.mxu0 0.0
          %469 = vmatpush1.msra.mxu0 %v431
          %470 = vmatprep.subr.mxu0 0.0
          %471 = vmatpush1.msra.mxu0 %v432
          %472 = vmatprep.subr.mxu0 0.0
          %473 = vmatpush1.msra.mxu0 %v433
          %474 = vmatprep.subr.mxu0 0.0
          %475 = vmatpush1.msra.mxu0 %v434
          %476 = vmatprep.subr.mxu0 0.0
          %477 = vmatpush1.msra.mxu0 %v435
          %478 = vmatprep.subr.mxu0 0.0
          %479 = vmatpush1.msra.mxu0 %v436
          %480 = vmatprep.subr.mxu0 0.0
          %481 = vmatpush1.msra.mxu0 %v437
          %482 = vmatprep.subr.mxu0 0.0
          %483 = vmatpush1.msra.mxu0 %v438
          %484 = vmatprep.subr.mxu0 0.0
          %485 = vmatpush1.msra.mxu0 %v439
          %486 = vmatprep.subr.mxu0 0.0
          %487 = vmatpush1.msra.mxu0 %v440
          %488 = vmatprep.subr.mxu0 0.0
          %489 = vmatpush1.msra.mxu0 %v441
          %490 = vmatprep.subr.mxu0 0.0
          %491 = vmatpush1.msra.mxu0 %v442
          %492 = vmatprep.subr.mxu0 0.0
          %493 = vmatpush1.msra.mxu0 %v443
          %494 = vmatprep.subr.mxu0 0.0
          %495 = vmatpush1.msra.mxu0 %v444
          %496 = vmatprep.subr.mxu0 0.0
          %497 = vmatpush1.msra.mxu0 %v445
          %498 = vmatprep.subr.mxu0 0.0
          %499 = vmatpush1.msra.mxu0 %v446
          %500 = vmatprep.subr.mxu0 0.0
          %501 = vmatpush1.msra.mxu0 %v447
          %502 = vmatprep.subr.mxu0 0.0
          %503 = vmatpush1.msra.mxu0 %v448
          %504 = vmatprep.subr.mxu0 0.0
          %505 = vmatpush1.msra.mxu0 %v449
          %506 = vmatprep.subr.mxu0 0.0
          %507 = vmatpush1.msra.mxu0 %v450
          %508 = vmatprep.subr.mxu0 0.0
          %509 = vmatpush1.msra.mxu0 %v451
          %510 = vmatprep.subr.mxu0 0.0
          %511 = vmatpush1.msra.mxu0 %v452
          %512 = vmatprep.subr.mxu0 0.0
          %513 = vmatpush1.msra.mxu0 %v453
          %514 = vmatprep.subr.mxu0 0.0
          %515 = vmatpush1.msra.mxu0 %v454
          %516 = vmatprep.subr.mxu0 0.0
          %517 = vmatpush1.msra.mxu0 %v455
          %518 = vmatprep.subr.mxu0 0.0
          %519 = vmatpush1.msra.mxu0 %v456
          %520 = vmatprep.subr.mxu0 0.0
          %521 = vmatpush1.msra.mxu0 %v457
          %522 = vmatprep.mubr.f32.mxu0 1.0
          %523 = vmatmul.mubr.f32.gmra.mrb[0].mxu0 1.0
          %v524 = vpop.f32.mrb[0].mxu0
          %v525 = vadd.f32 0.0, %v524
          %v526 = vpop.f32.mrb[0].mxu0
          %527 = vdwg.mxu0
          %v528 = vld [vmem:[%s3] sm:$0xff]
          %v529 = vld [vmem:[%s3 + $0x8] sm:$0xff]
          %v530 = vld [vmem:[%s3 + $0x10] sm:$0xff]
          %v531 = vld [vmem:[%s3 + $0x18] sm:$0xff]
          %v532 = vld [vmem:[%s3 + $0x20] sm:$0xff]
          %v533 = vld [vmem:[%s3 + $0x28] sm:$0xff]
          %v534 = vld [vmem:[%s3 + $0x30] sm:$0xff]
          %v535 = vld [vmem:[%s3 + $0x38] sm:$0xff]
          %vm536 = vcmask 523264
          %v538 = vsel %vm536, %v423, 0
          %540 = vmatprep.subr.mxu0 0.0
          %541 = vmatpush1.msra.mxu0 %v528
          %542 = vmatprep.subr.mxu0 0.0
          %543 = vmatpush1.msra.mxu0 %v529
          %544 = vmatprep.subr.mxu0 0.0
          %545 = vmatpush1.msra.mxu0 %v530
          %546 = vmatprep.subr.mxu0 0.0
          %547 = vmatpush1.msra.mxu0 %v531
          %548 = vmatprep.subr.mxu0 0.0
          %549 = vmatpush1.msra.mxu0 %v532
          %550 = vmatprep.subr.mxu0 0.0
          %551 = vmatpush1.msra.mxu0 %v533
          %552 = vmatprep.subr.mxu0 0.0
          %553 = vmatpush1.msra.mxu0 %v534
          %554 = vmatprep.subr.mxu0 0.0
          %555 = vmatpush1.msra.mxu0 %v535
          %556 = vmatprep.subr.mxu0 0.0
          %557 = vmatpush1.msra.mxu0 0.0
          %558 = vmatprep.subr.mxu0 0.0
          %559 = vmatpush1.msra.mxu0 0.0
          %560 = vmatprep.subr.mxu0 0.0
          %561 = vmatpush1.msra.mxu0 0.0
          %562 = vmatprep.subr.mxu0 0.0
          %563 = vmatpush1.msra.mxu0 0.0
          %564 = vmatprep.subr.mxu0 0.0
          %565 = vmatpush1.msra.mxu0 0.0
          %566 = vmatprep.subr.mxu0 0.0
          %567 = vmatpush1.msra.mxu0 0.0
          %568 = vmatprep.subr.mxu0 0.0
          %569 = vmatpush1.msra.mxu0 0.0
          %570 = vmatprep.subr.mxu0 0.0
          %571 = vmatpush1.msra.mxu0 0.0
          %572 = vmatprep.subr.mxu0 0.0
          %573 = vmatpush1.msra.mxu0 0.0
          %574 = vmatprep.subr.mxu0 0.0
          %575 = vmatpush1.msra.mxu0 0.0
          %576 = vmatprep.subr.mxu0 0.0
          %577 = vmatpush1.msra.mxu0 0.0
          %578 = vmatprep.subr.mxu0 0.0
          %579 = vmatpush1.msra.mxu0 0.0
          %580 = vmatprep.subr.mxu0 0.0
          %581 = vmatpush1.msra.mxu0 0.0
          %582 = vmatprep.subr.mxu0 0.0
          %583 = vmatpush1.msra.mxu0 0.0
          %584 = vmatprep.subr.mxu0 0.0
          %585 = vmatpush1.msra.mxu0 0.0
          %586 = vmatprep.subr.mxu0 0.0
          %587 = vmatpush1.msra.mxu0 0.0
          %588 = vmatprep.subr.mxu0 0.0
          %589 = vmatpush1.msra.mxu0 0.0
          %590 = vmatprep.subr.mxu0 0.0
          %591 = vmatpush1.msra.mxu0 0.0
          %592 = vmatprep.subr.mxu0 0.0
          %593 = vmatpush1.msra.mxu0 0.0
          %594 = vmatprep.subr.mxu0 0.0
          %595 = vmatpush1.msra.mxu0 0.0
          %596 = vmatprep.subr.mxu0 0.0
          %597 = vmatpush1.msra.mxu0 0.0
          %598 = vmatprep.subr.mxu0 0.0
          %599 = vmatpush1.msra.mxu0 0.0
          %600 = vmatprep.subr.mxu0 0.0
          %601 = vmatpush1.msra.mxu0 0.0
          %602 = vmatprep.subr.mxu0 0.0
          %603 = vmatpush1.msra.mxu0 0.0
          %604 = vmatprep.mubr.f32.mxu0 0.0
          %605 = vmatmul.mubr.f32.gmra.mrb[0].mxu0 %v538
          %v606 = vpop.f32.mrb[0].mxu0
          %v607 = vadd.f32 0.0, %v606
          %v608 = vpop.f32.mrb[0].mxu0
          %609 = vdwg.mxu0
          %v611 = vsel %vm536, %v525, 0
          %613 = vmatprep.subr.mxu0 0.0
          %614 = vmatpush1.msra.mxu0 %v528
          %615 = vmatprep.subr.mxu0 0.0
          %616 = vmatpush1.msra.mxu0 %v529
          %617 = vmatprep.subr.mxu0 0.0
          %618 = vmatpush1.msra.mxu0 %v530
          %619 = vmatprep.subr.mxu0 0.0
          %620 = vmatpush1.msra.mxu0 %v531
          %621 = vmatprep.subr.mxu0 0.0
          %622 = vmatpush1.msra.mxu0 %v532
          %623 = vmatprep.subr.mxu0 0.0
          %624 = vmatpush1.msra.mxu0 %v533
          %625 = vmatprep.subr.mxu0 0.0
          %626 = vmatpush1.msra.mxu0 %v534
          %627 = vmatprep.subr.mxu0 0.0
          %628 = vmatpush1.msra.mxu0 %v535
          %629 = vmatprep.subr.mxu0 0.0
          %630 = vmatpush1.msra.mxu0 0.0
          %631 = vmatprep.subr.mxu0 0.0
          %632 = vmatpush1.msra.mxu0 0.0
          %633 = vmatprep.subr.mxu0 0.0
          %634 = vmatpush1.msra.mxu0 0.0
          %635 = vmatprep.subr.mxu0 0.0
          %636 = vmatpush1.msra.mxu0 0.0
          %637 = vmatprep.subr.mxu0 0.0
          %638 = vmatpush1.msra.mxu0 0.0
          %639 = vmatprep.subr.mxu0 0.0
          %640 = vmatpush1.msra.mxu0 0.0
          %641 = vmatprep.subr.mxu0 0.0
          %642 = vmatpush1.msra.mxu0 0.0
          %643 = vmatprep.subr.mxu0 0.0
          %644 = vmatpush1.msra.mxu0 0.0
          %645 = vmatprep.subr.mxu0 0.0
          %646 = vmatpush1.msra.mxu0 0.0
          %647 = vmatprep.subr.mxu0 0.0
          %648 = vmatpush1.msra.mxu0 0.0
          %649 = vmatprep.subr.mxu0 0.0
          %650 = vmatpush1.msra.mxu0 0.0
          %651 = vmatprep.subr.mxu0 0.0
          %652 = vmatpush1.msra.mxu0 0.0
          %653 = vmatprep.subr.mxu0 0.0
          %654 = vmatpush1.msra.mxu0 0.0
          %655 = vmatprep.subr.mxu0 0.0
          %656 = vmatpush1.msra.mxu0 0.0
          %657 = vmatprep.subr.mxu0 0.0
          %658 = vmatpush1.msra.mxu0 0.0
          %659 = vmatprep.subr.mxu0 0.0
          %660 = vmatpush1.msra.mxu0 0.0
          %661 = vmatprep.subr.mxu0 0.0
          %662 = vmatpush1.msra.mxu0 0.0
          %663 = vmatprep.subr.mxu0 0.0
          %664 = vmatpush1.msra.mxu0 0.0
          %665 = vmatprep.subr.mxu0 0.0
          %666 = vmatpush1.msra.mxu0 0.0
          %667 = vmatprep.subr.mxu0 0.0
          %668 = vmatpush1.msra.mxu0 0.0
          %669 = vmatprep.subr.mxu0 0.0
          %670 = vmatpush1.msra.mxu0 0.0
          %671 = vmatprep.subr.mxu0 0.0
          %672 = vmatpush1.msra.mxu0 0.0
          %673 = vmatprep.subr.mxu0 0.0
          %674 = vmatpush1.msra.mxu0 0.0
          %675 = vmatprep.subr.mxu0 0.0
          %676 = vmatpush1.msra.mxu0 0.0
          %677 = vmatprep.mubr.f32.mxu0 0.0
          %678 = vmatmul.mubr.f32.gmra.mrb[0].mxu0 %v611
          %v679 = vpop.f32.mrb[0].mxu0
          %v680 = vadd.f32 0.0, %v679
          %v681 = vpop.f32.mrb[0].mxu0
          %682 = vdwg.mxu0
          %v683 = vmul.f32 %v607, %v607
          %v684 = vsub.f32 %v680, %v683
          %v685 = vadd.f32 %v684, 1e-06
          %v686 = vrsqrt.pop %v685
          %v687 = vlaneseq
          %v688 = vshrl.u32 %v687, 7
          %v689 = vsub.s32 0, %v688
          %v690 = vrot.slane %v607, %v689
          %v691 = vsub.f32 %v324, %v690
          %v692 = vsub.f32 %v325, %v690
          %v693 = vsub.f32 %v326, %v690
          %v694 = vsub.f32 %v327, %v690
          %v695 = vsub.f32 %v328, %v690
          %v696 = vsub.f32 %v329, %v690
          %v697 = vsub.f32 %v330, %v690
          %v698 = vsub.f32 %v331, %v690
          %v699 = vsub.f32 %v332, %v690
          %v700 = vsub.f32 %v333, %v690
          %v701 = vsub.f32 %v334, %v690
          %v702 = vsub.f32 %v335, %v690
          %v703 = vsub.f32 %v336, %v690
          %v704 = vsub.f32 %v337, %v690
          %v705 = vsub.f32 %v338, %v690
          %v706 = vsub.f32 %v339, %v690
          %v707 = vsub.f32 %v340, %v690
          %v708 = vsub.f32 %v341, %v690
          %v709 = vsub.f32 %v342, %v690
          %v710 = vsub.f32 %v343, %v690
          %v711 = vsub.f32 %v344, %v690
          %v712 = vsub.f32 %v345, %v690
          %v713 = vsub.f32 %v346, %v690
          %v714 = vsub.f32 %v347, %v690
          %v715 = vsub.f32 %v348, %v690
          %v716 = vsub.f32 %v349, %v690
          %v717 = vsub.f32 %v350, %v690
          %v718 = vsub.f32 %v351, %v690
          %v719 = vsub.f32 %v352, %v690
          %v720 = vsub.f32 %v353, %v690
          %v721 = vsub.f32 %v354, %v690
          %v722 = vsub.f32 %v355, %v690
          %v723 = vld [vmem:[%s1] sm:$0x1]
          %v724 = vmul.f32 %v686, %v723
          %v725 = vlaneseq
          %v726 = vshrl.u32 %v725, 7
          %v727 = vsub.s32 0, %v726
          %v728 = vrot.slane %v724, %v727
          %v729 = vmul.f32 %v691, %v728
          %v730 = vmul.f32 %v692, %v728
          %v731 = vmul.f32 %v693, %v728
          %v732 = vmul.f32 %v694, %v728
          %v733 = vmul.f32 %v695, %v728
          %v734 = vmul.f32 %v696, %v728
          %v735 = vmul.f32 %v697, %v728
          %v736 = vmul.f32 %v698, %v728
          %v737 = vmul.f32 %v699, %v728
          %v738 = vmul.f32 %v700, %v728
          %v739 = vmul.f32 %v701, %v728
          %v740 = vmul.f32 %v702, %v728
          %v741 = vmul.f32 %v703, %v728
          %v742 = vmul.f32 %v704, %v728
          %v743 = vmul.f32 %v705, %v728
          %v744 = vmul.f32 %v706, %v728
          %v745 = vmul.f32 %v707, %v728
          %v746 = vmul.f32 %v708, %v728
          %v747 = vmul.f32 %v709, %v728
          %v748 = vmul.f32 %v710, %v728
          %v749 = vmul.f32 %v711, %v728
          %v750 = vmul.f32 %v712, %v728
          %v751 = vmul.f32 %v713, %v728
          %v752 = vmul.f32 %v714, %v728
          %v753 = vmul.f32 %v715, %v728
          %v754 = vmul.f32 %v716, %v728
          %v755 = vmul.f32 %v717, %v728
          %v756 = vmul.f32 %v718, %v728
          %v757 = vmul.f32 %v719, %v728
          %v758 = vmul.f32 %v720, %v728
          %v759 = vmul.f32 %v721, %v728
          %v760 = vmul.f32 %v722, %v728
          %v761 = vld [vmem:[%s2] sm:$0x1]
          %v763 = vlaneseq
          %v764 = vshrl.u32 %v763, 7
          %v765 = vsub.s32 0, %v764
          %v766 = vrot.slane %v761, %v765
          %v768 = vadd.f32 %v729, %v766
          %v769 = vadd.f32 %v730, %v766
          %v770 = vadd.f32 %v731, %v766
          %v771 = vadd.f32 %v732, %v766
          %v772 = vadd.f32 %v733, %v766
          %v773 = vadd.f32 %v734, %v766
          %v774 = vadd.f32 %v735, %v766
          %v775 = vadd.f32 %v736, %v766
          %v776 = vadd.f32 %v737, %v766
          %v777 = vadd.f32 %v738, %v766
          %v778 = vadd.f32 %v739, %v766
          %v779 = vadd.f32 %v740, %v766
          %v780 = vadd.f32 %v741, %v766
          %v781 = vadd.f32 %v742, %v766
          %v782 = vadd.f32 %v743, %v766
          %v783 = vadd.f32 %v744, %v766
          %v784 = vadd.f32 %v745, %v766
          %v785 = vadd.f32 %v746, %v766
          %v786 = vadd.f32 %v747, %v766
          %v787 = vadd.f32 %v748, %v766
          %v788 = vadd.f32 %v749, %v766
          %v789 = vadd.f32 %v750, %v766
          %v790 = vadd.f32 %v751, %v766
          %v791 = vadd.f32 %v752, %v766
          %v792 = vadd.f32 %v753, %v766
          %v793 = vadd.f32 %v754, %v766
          %v794 = vadd.f32 %v755, %v766
          %v795 = vadd.f32 %v756, %v766
          %v796 = vadd.f32 %v757, %v766
          %v797 = vadd.f32 %v758, %v766
          %v798 = vadd.f32 %v759, %v766
          %v799 = vadd.f32 %v760, %v766
          %v800 = vpack.c.bf16 %v769, %v768
          %v801 = vpack.c.bf16 %v771, %v770
          %v802 = vpack.c.bf16 %v773, %v772
          %v803 = vpack.c.bf16 %v775, %v774
          %v804 = vpack.c.bf16 %v777, %v776
          %v805 = vpack.c.bf16 %v779, %v778
          %v806 = vpack.c.bf16 %v781, %v780
          %v807 = vpack.c.bf16 %v783, %v782
          %v808 = vpack.c.bf16 %v785, %v784
          %v809 = vpack.c.bf16 %v787, %v786
          %v810 = vpack.c.bf16 %v789, %v788
          %v811 = vpack.c.bf16 %v791, %v790
          %v812 = vpack.c.bf16 %v793, %v792
          %v813 = vpack.c.bf16 %v795, %v794
          %v814 = vpack.c.bf16 %v797, %v796
          %v815 = vpack.c.bf16 %v799, %v798
          %v816 = vld [vmem:[%s4] sm:$0xff]
          %v817 = vld [vmem:[%s4 + $0x8] sm:$0xff]
          %v818 = vld [vmem:[%s4 + $0x10] sm:$0xff]
          %v819 = vld [vmem:[%s4 + $0x18] sm:$0xff]
          %v820 = vld [vmem:[%s4 + $0x20] sm:$0xff]
          %v821 = vld [vmem:[%s4 + $0x28] sm:$0xff]
          %v822 = vld [vmem:[%s4 + $0x30] sm:$0xff]
          %v823 = vld [vmem:[%s4 + $0x38] sm:$0xff]
          %v824 = vld [vmem:[%s5] sm:$0x3]
          %v826 = vlaneseq
          %v827 = vshrl.u32 %v826, 7
          %v828 = vsub.s32 0, %v827
          %v829 = vrot.slane %v824, %v828
          %v830 = vlaneseq
          %v831 = vshrl.u32 %v830, 7
          %v832 = vsub.s32 1, %v831
          %v833 = vrot.slane %v824, %v832
          %v844 = vunpack.c.l.b16 %v816
          %v845 = vunpack.c.h.b16 %v816
          %v846 = vunpack.c.l.b16 %v817
          %v847 = vunpack.c.h.b16 %v817
          %v848 = vunpack.c.l.b16 %v818
          %v849 = vunpack.c.h.b16 %v818
          %v850 = vunpack.c.l.b16 %v819
          %v851 = vunpack.c.h.b16 %v819
          %v852 = vunpack.c.l.b16 %v820
          %v853 = vunpack.c.h.b16 %v820
          %v854 = vunpack.c.l.b16 %v821
          %v855 = vunpack.c.h.b16 %v821
          %v856 = vunpack.c.l.b16 %v822
          %v857 = vunpack.c.h.b16 %v822
          %v858 = vunpack.c.l.b16 %v823
          %v859 = vunpack.c.h.b16 %v823
          %v860 = vpack.c.b16 %v846, %v844
          %v861 = vpack.c.b16 %v847, %v845
          %v862 = vpack.c.b16 %v850, %v848
          %v863 = vpack.c.b16 %v851, %v849
          %v864 = vpack.c.b16 %v854, %v852
          %v865 = vpack.c.b16 %v855, %v853
          %v866 = vpack.c.b16 %v858, %v856
          %v867 = vpack.c.b16 %v859, %v857
          %v877 = vsel %vm536, %v800, 0
          %v880 = vsel %vm536, %v801, 0
          %v883 = vsel %vm536, %v802, 0
          %v886 = vsel %vm536, %v803, 0
          %v889 = vsel %vm536, %v804, 0
          %v892 = vsel %vm536, %v805, 0
          %v895 = vsel %vm536, %v806, 0
          %v898 = vsel %vm536, %v807, 0
          %v901 = vsel %vm536, %v808, 0
          %v904 = vsel %vm536, %v809, 0
          %v907 = vsel %vm536, %v810, 0
          %v910 = vsel %vm536, %v811, 0
          %v913 = vsel %vm536, %v812, 0
          %v916 = vsel %vm536, %v813, 0
          %v919 = vsel %vm536, %v814, 0
          %v922 = vsel %vm536, %v815, 0
          %924 = vmatprep.subr.bf16.mxu0 %v861
          %925 = vmatpush1.bf16.msra.mxu0 %v860
          %926 = vmatprep.subr.bf16.mxu0 %v863
          %927 = vmatpush1.bf16.msra.mxu0 %v862
          %928 = vmatprep.subr.bf16.mxu0 %v865
          %929 = vmatpush1.bf16.msra.mxu0 %v864
          %930 = vmatprep.subr.bf16.mxu0 %v867
          %931 = vmatpush1.bf16.msra.mxu0 %v866
          %932 = vmatprep.subr.bf16.mxu0 0
          %933 = vmatpush1.bf16.msra.mxu0 0
          %934 = vmatprep.subr.bf16.mxu0 0
          %935 = vmatpush1.bf16.msra.mxu0 0
          %936 = vmatprep.subr.bf16.mxu0 0
          %937 = vmatpush1.bf16.msra.mxu0 0
          %938 = vmatprep.subr.bf16.mxu0 0
          %939 = vmatpush1.bf16.msra.mxu0 0
          %940 = vmatprep.subr.bf16.mxu0 0
          %941 = vmatpush1.bf16.msra.mxu0 0
          %942 = vmatprep.subr.bf16.mxu0 0
          %943 = vmatpush1.bf16.msra.mxu0 0
          %944 = vmatprep.subr.bf16.mxu0 0
          %945 = vmatpush1.bf16.msra.mxu0 0
          %946 = vmatprep.subr.bf16.mxu0 0
          %947 = vmatpush1.bf16.msra.mxu0 0
          %948 = vmatprep.subr.bf16.mxu0 0
          %949 = vmatpush1.bf16.msra.mxu0 0
          %950 = vmatprep.subr.bf16.mxu0 0
          %951 = vmatpush1.bf16.msra.mxu0 0
          %952 = vmatprep.subr.bf16.mxu0 0
          %953 = vmatpush1.bf16.msra.mxu0 0
          %954 = vmatprep.subr.bf16.mxu0 0
          %955 = vmatpush1.bf16.msra.mxu0 0
          %956 = vmatprep.mubr.bf16.mxu0 0
          %957 = vmatmul.mubr.bf16.gmra.mrb[0].mxu0 %v877
          %v958 = vpop.f32.mrb[0].mxu0
          %v959 = vadd.f32 %v829, %v958
          %v960 = vpop.f32.mrb[0].mxu0
          %v961 = vadd.f32 %v833, %v960
          %v962 = vpop.f32.mrb[0].mxu0
          %v963 = vadd.f32 %v829, %v962
          %v964 = vpop.f32.mrb[0].mxu0
          %v965 = vadd.f32 %v833, %v964
          %966 = vmatprep.mubr.bf16.mxu0 0
          %967 = vmatmul.mubr.bf16.gmra.mrb[0].mxu0 %v880
          %v968 = vpop.f32.mrb[0].mxu0
          %v969 = vadd.f32 %v829, %v968
          %v970 = vpop.f32.mrb[0].mxu0
          %v971 = vadd.f32 %v833, %v970
          %v972 = vpop.f32.mrb[0].mxu0
          %v973 = vadd.f32 %v829, %v972
          %v974 = vpop.f32.mrb[0].mxu0
          %v975 = vadd.f32 %v833, %v974
          %976 = vmatprep.mubr.bf16.mxu0 0
          %977 = vmatmul.mubr.bf16.gmra.mrb[0].mxu0 %v883
          %v978 = vpop.f32.mrb[0].mxu0
          %v979 = vadd.f32 %v829, %v978
          %v980 = vpop.f32.mrb[0].mxu0
          %v981 = vadd.f32 %v833, %v980
          %v982 = vpop.f32.mrb[0].mxu0
          %v983 = vadd.f32 %v829, %v982
          %v984 = vpop.f32.mrb[0].mxu0
          %v985 = vadd.f32 %v833, %v984
          %986 = vmatprep.mubr.bf16.mxu0 0
          %987 = vmatmul.mubr.bf16.gmra.mrb[0].mxu0 %v886
          %v988 = vpop.f32.mrb[0].mxu0
          %v989 = vadd.f32 %v829, %v988
          %v990 = vpop.f32.mrb[0].mxu0
          %v991 = vadd.f32 %v833, %v990
          %v992 = vpop.f32.mrb[0].mxu0
          %v993 = vadd.f32 %v829, %v992
          %v994 = vpop.f32.mrb[0].mxu0
          %v995 = vadd.f32 %v833, %v994
          %996 = vmatprep.mubr.bf16.mxu0 0
          %997 = vmatmul.mubr.bf16.gmra.mrb[0].mxu0 %v889
          %v998 = vpop.f32.mrb[0].mxu0
          %v999 = vadd.f32 %v829, %v998
          %v1000 = vpop.f32.mrb[0].mxu0
          %v1001 = vadd.f32 %v833, %v1000
          %v1002 = vpop.f32.mrb[0].mxu0
          %v1003 = vadd.f32 %v829, %v1002
          %v1004 = vpop.f32.mrb[0].mxu0
          %v1005 = vadd.f32 %v833, %v1004
          %1006 = vmatprep.mubr.bf16.mxu0 0
          %1007 = vmatmul.mubr.bf16.gmra.mrb[0].mxu0 %v892
          %v1008 = vpop.f32.mrb[0].mxu0
          %v1009 = vadd.f32 %v829, %v1008
          %v1010 = vpop.f32.mrb[0].mxu0
          %v1011 = vadd.f32 %v833, %v1010
          %v1012 = vpop.f32.mrb[0].mxu0
          %v1013 = vadd.f32 %v829, %v1012
          %v1014 = vpop.f32.mrb[0].mxu0
          %v1015 = vadd.f32 %v833, %v1014
          %1016 = vmatprep.mubr.bf16.mxu0 0
          %1017 = vmatmul.mubr.bf16.gmra.mrb[0].mxu0 %v895
          %v1018 = vpop.f32.mrb[0].mxu0
          %v1019 = vadd.f32 %v829, %v1018
          %v1020 = vpop.f32.mrb[0].mxu0
          %v1021 = vadd.f32 %v833, %v1020
          %v1022 = vpop.f32.mrb[0].mxu0
          %v1023 = vadd.f32 %v829, %v1022
          %v1024 = vpop.f32.mrb[0].mxu0
          %v1025 = vadd.f32 %v833, %v1024
          %1026 = vmatprep.mubr.bf16.mxu0 0
          %1027 = vmatmul.mubr.bf16.gmra.mrb[0].mxu0 %v898
          %v1028 = vpop.f32.mrb[0].mxu0
          %v1029 = vadd.f32 %v829, %v1028
          %v1030 = vpop.f32.mrb[0].mxu0
          %v1031 = vadd.f32 %v833, %v1030
          %v1032 = vpop.f32.mrb[0].mxu0
          %v1033 = vadd.f32 %v829, %v1032
          %v1034 = vpop.f32.mrb[0].mxu0
          %v1035 = vadd.f32 %v833, %v1034
          %1036 = vmatprep.mubr.bf16.mxu0 0
          %1037 = vmatmul.mubr.bf16.gmra.mrb[0].mxu0 %v901
          %v1038 = vpop.f32.mrb[0].mxu0
          %v1039 = vadd.f32 %v829, %v1038
          %v1040 = vpop.f32.mrb[0].mxu0
          %v1041 = vadd.f32 %v833, %v1040
          %v1042 = vpop.f32.mrb[0].mxu0
          %v1043 = vadd.f32 %v829, %v1042
          %v1044 = vpop.f32.mrb[0].mxu0
          %v1045 = vadd.f32 %v833, %v1044
          %1046 = vmatprep.mubr.bf16.mxu0 0
          %1047 = vmatmul.mubr.bf16.gmra.mrb[0].mxu0 %v904
          %v1048 = vpop.f32.mrb[0].mxu0
          %v1049 = vadd.f32 %v829, %v1048
          %v1050 = vpop.f32.mrb[0].mxu0
          %v1051 = vadd.f32 %v833, %v1050
          %v1052 = vpop.f32.mrb[0].mxu0
          %v1053 = vadd.f32 %v829, %v1052
          %v1054 = vpop.f32.mrb[0].mxu0
          %v1055 = vadd.f32 %v833, %v1054
          %1056 = vmatprep.mubr.bf16.mxu0 0
          %1057 = vmatmul.mubr.bf16.gmra.mrb[0].mxu0 %v907
          %v1058 = vpop.f32.mrb[0].mxu0
          %v1059 = vadd.f32 %v829, %v1058
          %v1060 = vpop.f32.mrb[0].mxu0
          %v1061 = vadd.f32 %v833, %v1060
          %v1062 = vpop.f32.mrb[0].mxu0
          %v1063 = vadd.f32 %v829, %v1062
          %v1064 = vpop.f32.mrb[0].mxu0
          %v1065 = vadd.f32 %v833, %v1064
          %1066 = vmatprep.mubr.bf16.mxu0 0
          %1067 = vmatmul.mubr.bf16.gmra.mrb[0].mxu0 %v910
          %v1068 = vpop.f32.mrb[0].mxu0
          %v1069 = vadd.f32 %v829, %v1068
          %v1070 = vpop.f32.mrb[0].mxu0
          %v1071 = vadd.f32 %v833, %v1070
          %v1072 = vpop.f32.mrb[0].mxu0
          %v1073 = vadd.f32 %v829, %v1072
          %v1074 = vpop.f32.mrb[0].mxu0
          %v1075 = vadd.f32 %v833, %v1074
          %1076 = vmatprep.mubr.bf16.mxu0 0
          %1077 = vmatmul.mubr.bf16.gmra.mrb[0].mxu0 %v913
          %v1078 = vpop.f32.mrb[0].mxu0
          %v1079 = vadd.f32 %v829, %v1078
          %v1080 = vpop.f32.mrb[0].mxu0
          %v1081 = vadd.f32 %v833, %v1080
          %v1082 = vpop.f32.mrb[0].mxu0
          %v1083 = vadd.f32 %v829, %v1082
          %v1084 = vpop.f32.mrb[0].mxu0
          %v1085 = vadd.f32 %v833, %v1084
          %1086 = vmatprep.mubr.bf16.mxu0 0
          %1087 = vmatmul.mubr.bf16.gmra.mrb[0].mxu0 %v916
          %v1088 = vpop.f32.mrb[0].mxu0
          %v1089 = vadd.f32 %v829, %v1088
          %v1090 = vpop.f32.mrb[0].mxu0
          %v1091 = vadd.f32 %v833, %v1090
          %v1092 = vpop.f32.mrb[0].mxu0
          %v1093 = vadd.f32 %v829, %v1092
          %v1094 = vpop.f32.mrb[0].mxu0
          %v1095 = vadd.f32 %v833, %v1094
          %1096 = vmatprep.mubr.bf16.mxu0 0
          %1097 = vmatmul.mubr.bf16.gmra.mrb[0].mxu0 %v919
          %v1098 = vpop.f32.mrb[0].mxu0
          %v1099 = vadd.f32 %v829, %v1098
          %v1100 = vpop.f32.mrb[0].mxu0
          %v1101 = vadd.f32 %v833, %v1100
          %v1102 = vpop.f32.mrb[0].mxu0
          %v1103 = vadd.f32 %v829, %v1102
          %v1104 = vpop.f32.mrb[0].mxu0
          %v1105 = vadd.f32 %v833, %v1104
          %1106 = vmatprep.mubr.bf16.mxu0 0
          %1107 = vmatmul.mubr.bf16.gmra.mrb[0].mxu0 %v922
          %v1108 = vpop.f32.mrb[0].mxu0
          %v1109 = vadd.f32 %v829, %v1108
          %v1110 = vpop.f32.mrb[0].mxu0
          %v1111 = vadd.f32 %v833, %v1110
          %v1112 = vpop.f32.mrb[0].mxu0
          %v1113 = vadd.f32 %v829, %v1112
          %v1114 = vpop.f32.mrb[0].mxu0
          %v1115 = vadd.f32 %v833, %v1114
          %1116 = vdwg.mxu0
          %v1117 = vpack.c.bf16 %v963, %v959
          %v1118 = vpack.c.bf16 %v973, %v969
          %v1119 = vpack.c.bf16 %v983, %v979
          %v1120 = vpack.c.bf16 %v993, %v989
          %v1121 = vpack.c.bf16 %v1003, %v999
          %v1122 = vpack.c.bf16 %v1013, %v1009
          %v1123 = vpack.c.bf16 %v1023, %v1019
          %v1124 = vpack.c.bf16 %v1033, %v1029
          %v1125 = vpack.c.bf16 %v1043, %v1039
          %v1126 = vpack.c.bf16 %v1053, %v1049
          %v1127 = vpack.c.bf16 %v1063, %v1059
          %v1128 = vpack.c.bf16 %v1073, %v1069
          %v1129 = vpack.c.bf16 %v1083, %v1079
          %v1130 = vpack.c.bf16 %v1093, %v1089
          %v1131 = vpack.c.bf16 %v1103, %v1099
          %v1132 = vpack.c.bf16 %v1113, %v1109
          %1133 = vst.msk [vmem:[#allocation2] sm:$0xff] %vm536, %v1117
          %1134 = vst.msk [vmem:[#allocation2 + $0x8] sm:$0xff] %vm536, %v1118
          %1135 = vst.msk [vmem:[#allocation2 + $0x10] sm:$0xff] %vm536, %v1119
          %1136 = vst.msk [vmem:[#allocation2 + $0x18] sm:$0xff] %vm536, %v1120
          %1137 = vst.msk [vmem:[#allocation2 + $0x20] sm:$0xff] %vm536, %v1121
          %1138 = vst.msk [vmem:[#allocation2 + $0x28] sm:$0xff] %vm536, %v1122
          %1139 = vst.msk [vmem:[#allocation2 + $0x30] sm:$0xff] %vm536, %v1123
          %1140 = vst.msk [vmem:[#allocation2 + $0x38] sm:$0xff] %vm536, %v1124
          %1141 = vst.msk [vmem:[#allocation2 + $0x40] sm:$0xff] %vm536, %v1125
          %1142 = vst.msk [vmem:[#allocation2 + $0x48] sm:$0xff] %vm536, %v1126
          %1143 = vst.msk [vmem:[#allocation2 + $0x50] sm:$0xff] %vm536, %v1127
          %1144 = vst.msk [vmem:[#allocation2 + $0x58] sm:$0xff] %vm536, %v1128
          %1145 = vst.msk [vmem:[#allocation2 + $0x60] sm:$0xff] %vm536, %v1129
          %1146 = vst.msk [vmem:[#allocation2 + $0x68] sm:$0xff] %vm536, %v1130
          %1147 = vst.msk [vmem:[#allocation2 + $0x70] sm:$0xff] %vm536, %v1131
          %1148 = vst.msk [vmem:[#allocation2 + $0x78] sm:$0xff] %vm536, %v1132
          %1165 = vrot.lane.b32.xlu0 %v1117, 64
          %v1166 = vpop.permute.xlu0 %1165
          %1167 = vrot.lane.b32.xlu0 %v1118, 64
          %v1168 = vpop.permute.xlu0 %1167
          %1169 = vrot.lane.b32.xlu0 %v1119, 64
          %v1170 = vpop.permute.xlu0 %1169
          %1171 = vrot.lane.b32.xlu0 %v1120, 64
          %v1172 = vpop.permute.xlu0 %1171
          %1173 = vrot.lane.b32.xlu0 %v1121, 64
          %v1174 = vpop.permute.xlu0 %1173
          %1175 = vrot.lane.b32.xlu0 %v1122, 64
          %v1176 = vpop.permute.xlu0 %1175
          %1177 = vrot.lane.b32.xlu0 %v1123, 64
          %v1178 = vpop.permute.xlu0 %1177
          %1179 = vrot.lane.b32.xlu0 %v1124, 64
          %v1180 = vpop.permute.xlu0 %1179
          %1181 = vrot.lane.b32.xlu0 %v1125, 64
          %v1182 = vpop.permute.xlu0 %1181
          %1183 = vrot.lane.b32.xlu0 %v1126, 64
          %v1184 = vpop.permute.xlu0 %1183
          %1185 = vrot.lane.b32.xlu0 %v1127, 64
          %v1186 = vpop.permute.xlu0 %1185
          %1187 = vrot.lane.b32.xlu0 %v1128, 64
          %v1188 = vpop.permute.xlu0 %1187
          %1189 = vrot.lane.b32.xlu0 %v1129, 64
          %v1190 = vpop.permute.xlu0 %1189
          %1191 = vrot.lane.b32.xlu0 %v1130, 64
          %v1192 = vpop.permute.xlu0 %1191
          %1193 = vrot.lane.b32.xlu0 %v1131, 64
          %v1194 = vpop.permute.xlu0 %1193
          %1195 = vrot.lane.b32.xlu0 %v1132, 64
          %v1196 = vpop.permute.xlu0 %1195
          %1213 = vst.msk [vmem:[#allocation3] sm:$0xff] %vm536, %v1166
          %1214 = vst.msk [vmem:[#allocation3 + $0x8] sm:$0xff] %vm536, %v1168
          %1215 = vst.msk [vmem:[#allocation3 + $0x10] sm:$0xff] %vm536, %v1170
          %1216 = vst.msk [vmem:[#allocation3 + $0x18] sm:$0xff] %vm536, %v1172
          %1217 = vst.msk [vmem:[#allocation3 + $0x20] sm:$0xff] %vm536, %v1174
          %1218 = vst.msk [vmem:[#allocation3 + $0x28] sm:$0xff] %vm536, %v1176
          %1219 = vst.msk [vmem:[#allocation3 + $0x30] sm:$0xff] %vm536, %v1178
          %1220 = vst.msk [vmem:[#allocation3 + $0x38] sm:$0xff] %vm536, %v1180
          %1221 = vst.msk [vmem:[#allocation3 + $0x40] sm:$0xff] %vm536, %v1182
          %1222 = vst.msk [vmem:[#allocation3 + $0x48] sm:$0xff] %vm536, %v1184
          %1223 = vst.msk [vmem:[#allocation3 + $0x50] sm:$0xff] %vm536, %v1186
          %1224 = vst.msk [vmem:[#allocation3 + $0x58] sm:$0xff] %vm536, %v1188
          %1225 = vst.msk [vmem:[#allocation3 + $0x60] sm:$0xff] %vm536, %v1190
          %1226 = vst.msk [vmem:[#allocation3 + $0x68] sm:$0xff] %vm536, %v1192
          %1227 = vst.msk [vmem:[#allocation3 + $0x70] sm:$0xff] %vm536, %v1194
          %1228 = vst.msk [vmem:[#allocation3 + $0x78] sm:$0xff] %vm536, %v1196
          %v1229 = vpack.c.bf16 %v965, %v961
          %v1230 = vpack.c.bf16 %v975, %v971
          %v1231 = vpack.c.bf16 %v985, %v981
          %v1232 = vpack.c.bf16 %v995, %v991
          %v1233 = vpack.c.bf16 %v1005, %v1001
          %v1234 = vpack.c.bf16 %v1015, %v1011
          %v1235 = vpack.c.bf16 %v1025, %v1021
          %v1236 = vpack.c.bf16 %v1035, %v1031
          %v1237 = vpack.c.bf16 %v1045, %v1041
          %v1238 = vpack.c.bf16 %v1055, %v1051
          %v1239 = vpack.c.bf16 %v1065, %v1061
          %v1240 = vpack.c.bf16 %v1075, %v1071
          %v1241 = vpack.c.bf16 %v1085, %v1081
          %v1242 = vpack.c.bf16 %v1095, %v1091
          %v1243 = vpack.c.bf16 %v1105, %v1101
          %v1244 = vpack.c.bf16 %v1115, %v1111
          %1245 = vst.msk [vmem:[#allocation4] sm:$0xff] %vm536, %v1229
          %1246 = vst.msk [vmem:[#allocation4 + $0x8] sm:$0xff] %vm536, %v1230
          %1247 = vst.msk [vmem:[#allocation4 + $0x10] sm:$0xff] %vm536, %v1231
          %1248 = vst.msk [vmem:[#allocation4 + $0x18] sm:$0xff] %vm536, %v1232
          %1249 = vst.msk [vmem:[#allocation4 + $0x20] sm:$0xff] %vm536, %v1233
          %1250 = vst.msk [vmem:[#allocation4 + $0x28] sm:$0xff] %vm536, %v1234
          %1251 = vst.msk [vmem:[#allocation4 + $0x30] sm:$0xff] %vm536, %v1235
          %1252 = vst.msk [vmem:[#allocation4 + $0x38] sm:$0xff] %vm536, %v1236
          %1253 = vst.msk [vmem:[#allocation4 + $0x40] sm:$0xff] %vm536, %v1237
          %1254 = vst.msk [vmem:[#allocation4 + $0x48] sm:$0xff] %vm536, %v1238
          %1255 = vst.msk [vmem:[#allocation4 + $0x50] sm:$0xff] %vm536, %v1239
          %1256 = vst.msk [vmem:[#allocation4 + $0x58] sm:$0xff] %vm536, %v1240
          %1257 = vst.msk [vmem:[#allocation4 + $0x60] sm:$0xff] %vm536, %v1241
          %1258 = vst.msk [vmem:[#allocation4 + $0x68] sm:$0xff] %vm536, %v1242
          %1259 = vst.msk [vmem:[#allocation4 + $0x70] sm:$0xff] %vm536, %v1243
          %1260 = vst.msk [vmem:[#allocation4 + $0x78] sm:$0xff] %vm536, %v1244
        $region56: #{attn_block_forward.1} parent=51 // pred_fallthru
          _
        %s1261 = smul.u32 %s27, 128
        %s1262 = sshra.s32 %s1261, 4
        %s1263 = sand.u32 %s1261, 15
        %s1264 = smul.addr %s1262, 8
        %s1265 = scalar_lea.vmem [#allocation2], %s1264
        %v1266 = vld [vmem:[%s1265] sm:$0xff]
        %v1267 = vld [vmem:[%s1265 + $0x8] sm:$0xff]
        %v1268 = vld [vmem:[%s1265 + $0x10] sm:$0xff]
        %v1269 = vld [vmem:[%s1265 + $0x18] sm:$0xff]
        %v1270 = vld [vmem:[%s1265 + $0x20] sm:$0xff]
        %v1271 = vld [vmem:[%s1265 + $0x28] sm:$0xff]
        %v1272 = vld [vmem:[%s1265 + $0x30] sm:$0xff]
        %v1273 = vld [vmem:[%s1265 + $0x38] sm:$0xff]
        %v1274 = vld [vmem:[#allocation3] sm:$0xff]
        %v1275 = vld [vmem:[#allocation3 + $0x8] sm:$0xff]
        %v1276 = vld [vmem:[#allocation3 + $0x10] sm:$0xff]
        %v1277 = vld [vmem:[#allocation3 + $0x18] sm:$0xff]
        %v1278 = vld [vmem:[#allocation3 + $0x20] sm:$0xff]
        %v1279 = vld [vmem:[#allocation3 + $0x28] sm:$0xff]
        %v1280 = vld [vmem:[#allocation3 + $0x30] sm:$0xff]
        %v1281 = vld [vmem:[#allocation3 + $0x38] sm:$0xff]
        %v1282 = vld [vmem:[#allocation3 + $0x40] sm:$0xff]
        %v1283 = vld [vmem:[#allocation3 + $0x48] sm:$0xff]
        %v1284 = vld [vmem:[#allocation3 + $0x50] sm:$0xff]
        %v1285 = vld [vmem:[#allocation3 + $0x58] sm:$0xff]
        %v1286 = vld [vmem:[#allocation3 + $0x60] sm:$0xff]
        %v1287 = vld [vmem:[#allocation3 + $0x68] sm:$0xff]
        %v1288 = vld [vmem:[#allocation3 + $0x70] sm:$0xff]
        %v1289 = vld [vmem:[#allocation3 + $0x78] sm:$0xff]
        %vm1290 = vcmask 523264
        %v1292 = vsel %vm1290, %v1266, 0
        %v1295 = vsel %vm1290, %v1267, 0
        %v1298 = vsel %vm1290, %v1268, 0
        %v1301 = vsel %vm1290, %v1269, 0
        %v1304 = vsel %vm1290, %v1270, 0
        %v1307 = vsel %vm1290, %v1271, 0
        %v1310 = vsel %vm1290, %v1272, 0
        %v1313 = vsel %vm1290, %v1273, 0
        %v1316 = vsel %vm1290, %v1274, 0
        %v1319 = vsel %vm1290, %v1275, 0
        %v1322 = vsel %vm1290, %v1276, 0
        %v1325 = vsel %vm1290, %v1277, 0
        %v1328 = vsel %vm1290, %v1278, 0
        %v1331 = vsel %vm1290, %v1279, 0
        %v1334 = vsel %vm1290, %v1280, 0
        %v1337 = vsel %vm1290, %v1281, 0
        %v1340 = vsel %vm1290, %v1282, 0
        %v1343 = vsel %vm1290, %v1283, 0
        %v1346 = vsel %vm1290, %v1284, 0
        %v1349 = vsel %vm1290, %v1285, 0
        %v1352 = vsel %vm1290, %v1286, 0
        %v1355 = vsel %vm1290, %v1287, 0
        %v1358 = vsel %vm1290, %v1288, 0
        %v1361 = vsel %vm1290, %v1289, 0
        %1363 = vmatprep.subr.bf16.mxu0 0
        %1364 = vmatpush1.bf16.xpose.msra.mxu0 %v1316
        %1365 = vmatprep.subr.bf16.mxu0 0
        %1366 = vmatpush1.bf16.xpose.msra.mxu0 %v1319
        %1367 = vmatprep.subr.bf16.mxu0 0
        %1368 = vmatpush1.bf16.xpose.msra.mxu0 %v1322
        %1369 = vmatprep.subr.bf16.mxu0 0
        %1370 = vmatpush1.bf16.xpose.msra.mxu0 %v1325
        %1371 = vmatprep.subr.bf16.mxu0 0
        %1372 = vmatpush1.bf16.xpose.msra.mxu0 %v1328
        %1373 = vmatprep.subr.bf16.mxu0 0
        %1374 = vmatpush1.bf16.xpose.msra.mxu0 %v1331
        %1375 = vmatprep.subr.bf16.mxu0 0
        %1376 = vmatpush1.bf16.xpose.msra.mxu0 %v1334
        %1377 = vmatprep.subr.bf16.mxu0 0
        %1378 = vmatpush1.bf16.xpose.msra.mxu0 %v1337
        %1379 = vmatprep.subr.bf16.mxu0 0
        %1380 = vmatpush1.bf16.xpose.msra.mxu0 %v1340
        %1381 = vmatprep.subr.bf16.mxu0 0
        %1382 = vmatpush1.bf16.xpose.msra.mxu0 %v1343
        %1383 = vmatprep.subr.bf16.mxu0 0
        %1384 = vmatpush1.bf16.xpose.msra.mxu0 %v1346
        %1385 = vmatprep.subr.bf16.mxu0 0
        %1386 = vmatpush1.bf16.xpose.msra.mxu0 %v1349
        %1387 = vmatprep.subr.bf16.mxu0 0
        %1388 = vmatpush1.bf16.xpose.msra.mxu0 %v1352
        %1389 = vmatprep.subr.bf16.mxu0 0
        %1390 = vmatpush1.bf16.xpose.msra.mxu0 %v1355
        %1391 = vmatprep.subr.bf16.mxu0 0
        %1392 = vmatpush1.bf16.xpose.msra.mxu0 %v1358
        %1393 = vmatprep.subr.bf16.mxu0 0
        %1394 = vmatpush1.bf16.xpose.msra.mxu0 %v1361
        %1395 = vmatprep.mubr.bf16.mxu0 0
        %1396 = vmatmul.mubr.bf16.gmra.mrb[0].mxu0 %v1292
        %v1397 = vpop.f32.mrb[0].mxu0
        %v1398 = vadd.f32 0.0, %v1397
        %v1399 = vpop.f32.mrb[0].mxu0
        %v1400 = vadd.f32 0.0, %v1399
        %v1401 = vpop.f32.mrb[0].mxu0
        %v1402 = vadd.f32 0.0, %v1401
        %v1403 = vpop.f32.mrb[0].mxu0
        %v1404 = vadd.f32 0.0, %v1403
        %1405 = vmatprep.mubr.bf16.mxu0 0
        %1406 = vmatmul.mubr.bf16.gmra.mrb[0].mxu0 %v1295
        %v1407 = vpop.f32.mrb[0].mxu0
        %v1408 = vadd.f32 0.0, %v1407
        %v1409 = vpop.f32.mrb[0].mxu0
        %v1410 = vadd.f32 0.0, %v1409
        %v1411 = vpop.f32.mrb[0].mxu0
        %v1412 = vadd.f32 0.0, %v1411
        %v1413 = vpop.f32.mrb[0].mxu0
        %v1414 = vadd.f32 0.0, %v1413
        %1415 = vmatprep.mubr.bf16.mxu0 0
        %1416 = vmatmul.mubr.bf16.gmra.mrb[0].mxu0 %v1298
        %v1417 = vpop.f32.mrb[0].mxu0
        %v1418 = vadd.f32 0.0, %v1417
        %v1419 = vpop.f32.mrb[0].mxu0
        %v1420 = vadd.f32 0.0, %v1419
        %v1421 = vpop.f32.mrb[0].mxu0
        %v1422 = vadd.f32 0.0, %v1421
        %v1423 = vpop.f32.mrb[0].mxu0
        %v1424 = vadd.f32 0.0, %v1423
        %1425 = vmatprep.mubr.bf16.mxu0 0
        %1426 = vmatmul.mubr.bf16.gmra.mrb[0].mxu0 %v1301
        %v1427 = vpop.f32.mrb[0].mxu0
        %v1428 = vadd.f32 0.0, %v1427
        %v1429 = vpop.f32.mrb[0].mxu0
        %v1430 = vadd.f32 0.0, %v1429
        %v1431 = vpop.f32.mrb[0].mxu0
        %v1432 = vadd.f32 0.0, %v1431
        %v1433 = vpop.f32.mrb[0].mxu0
        %v1434 = vadd.f32 0.0, %v1433
        %1435 = vmatprep.mubr.bf16.mxu0 0
        %1436 = vmatmul.mubr.bf16.gmra.mrb[0].mxu0 %v1304
        %v1437 = vpop.f32.mrb[0].mxu0
        %v1438 = vadd.f32 0.0, %v1437
        %v1439 = vpop.f32.mrb[0].mxu0
        %v1440 = vadd.f32 0.0, %v1439
        %v1441 = vpop.f32.mrb[0].mxu0
        %v1442 = vadd.f32 0.0, %v1441
        %v1443 = vpop.f32.mrb[0].mxu0
        %v1444 = vadd.f32 0.0, %v1443
        %1445 = vmatprep.mubr.bf16.mxu0 0
        %1446 = vmatmul.mubr.bf16.gmra.mrb[0].mxu0 %v1307
        %v1447 = vpop.f32.mrb[0].mxu0
        %v1448 = vadd.f32 0.0, %v1447
        %v1449 = vpop.f32.mrb[0].mxu0
        %v1450 = vadd.f32 0.0, %v1449
        %v1451 = vpop.f32.mrb[0].mxu0
        %v1452 = vadd.f32 0.0, %v1451
        %v1453 = vpop.f32.mrb[0].mxu0
        %v1454 = vadd.f32 0.0, %v1453
        %1455 = vmatprep.mubr.bf16.mxu0 0
        %1456 = vmatmul.mubr.bf16.gmra.mrb[0].mxu0 %v1310
        %v1457 = vpop.f32.mrb[0].mxu0
        %v1458 = vadd.f32 0.0, %v1457
        %v1459 = vpop.f32.mrb[0].mxu0
        %v1460 = vadd.f32 0.0, %v1459
        %v1461 = vpop.f32.mrb[0].mxu0
        %v1462 = vadd.f32 0.0, %v1461
        %v1463 = vpop.f32.mrb[0].mxu0
        %v1464 = vadd.f32 0.0, %v1463
        %1465 = vmatprep.mubr.bf16.mxu0 0
        %1466 = vmatmul.mubr.bf16.gmra.mrb[0].mxu0 %v1313
        %v1467 = vpop.f32.mrb[0].mxu0
        %v1468 = vadd.f32 0.0, %v1467
        %v1469 = vpop.f32.mrb[0].mxu0
        %v1470 = vadd.f32 0.0, %v1469
        %v1471 = vpop.f32.mrb[0].mxu0
        %v1472 = vadd.f32 0.0, %v1471
        %v1473 = vpop.f32.mrb[0].mxu0
        %v1474 = vadd.f32 0.0, %v1473
        %1475 = vdwg.mxu0
        %v1476 = vmax.f32 %v1398, %v1400
        %1477 = vmax.xlane.f32.xlu0 %v1476
        %v1478 = vpop.xlane.xlu0 %1477
        %v1479 = vmax.f32 %v1402, %v1404
        %1480 = vmax.xlane.f32.xlu0 %v1479
        %v1481 = vpop.xlane.xlu0 %1480
        %v1482 = vmax.f32 %v1408, %v1410
        %1483 = vmax.xlane.f32.xlu0 %v1482
        %v1484 = vpop.xlane.xlu0 %1483
        %v1485 = vmax.f32 %v1412, %v1414
        %1486 = vmax.xlane.f32.xlu0 %v1485
        %v1487 = vpop.xlane.xlu0 %1486
        %v1488 = vmax.f32 %v1418, %v1420
        %1489 = vmax.xlane.f32.xlu0 %v1488
        %v1490 = vpop.xlane.xlu0 %1489
        %v1491 = vmax.f32 %v1422, %v1424
        %1492 = vmax.xlane.f32.xlu0 %v1491
        %v1493 = vpop.xlane.xlu0 %1492
        %v1494 = vmax.f32 %v1428, %v1430
        %1495 = vmax.xlane.f32.xlu0 %v1494
        %v1496 = vpop.xlane.xlu0 %1495
        %v1497 = vmax.f32 %v1432, %v1434
        %1498 = vmax.xlane.f32.xlu0 %v1497
        %v1499 = vpop.xlane.xlu0 %1498
        %v1500 = vmax.f32 %v1438, %v1440
        %1501 = vmax.xlane.f32.xlu0 %v1500
        %v1502 = vpop.xlane.xlu0 %1501
        %v1503 = vmax.f32 %v1442, %v1444
        %1504 = vmax.xlane.f32.xlu0 %v1503
        %v1505 = vpop.xlane.xlu0 %1504
        %v1506 = vmax.f32 %v1448, %v1450
        %1507 = vmax.xlane.f32.xlu0 %v1506
        %v1508 = vpop.xlane.xlu0 %1507
        %v1509 = vmax.f32 %v1452, %v1454
        %1510 = vmax.xlane.f32.xlu0 %v1509
        %v1511 = vpop.xlane.xlu0 %1510
        %v1512 = vmax.f32 %v1458, %v1460
        %1513 = vmax.xlane.f32.xlu0 %v1512
        %v1514 = vpop.xlane.xlu0 %1513
        %v1515 = vmax.f32 %v1462, %v1464
        %1516 = vmax.xlane.f32.xlu0 %v1515
        %v1517 = vpop.xlane.xlu0 %1516
        %v1518 = vmax.f32 %v1468, %v1470
        %1519 = vmax.xlane.f32.xlu0 %v1518
        %v1520 = vpop.xlane.xlu0 %1519
        %v1521 = vmax.f32 %v1472, %v1474
        %1522 = vmax.xlane.f32.xlu0 %v1521
        %v1523 = vpop.xlane.xlu0 %1522
        %v1524 = vsub.f32 %v1398, %v1478
        %v1525 = vsub.f32 %v1400, %v1478
        %v1526 = vsub.f32 %v1402, %v1481
        %v1527 = vsub.f32 %v1404, %v1481
        %v1528 = vsub.f32 %v1408, %v1484
        %v1529 = vsub.f32 %v1410, %v1484
        %v1530 = vsub.f32 %v1412, %v1487
        %v1531 = vsub.f32 %v1414, %v1487
        %v1532 = vsub.f32 %v1418, %v1490
        %v1533 = vsub.f32 %v1420, %v1490
        %v1534 = vsub.f32 %v1422, %v1493
        %v1535 = vsub.f32 %v1424, %v1493
        %v1536 = vsub.f32 %v1428, %v1496
        %v1537 = vsub.f32 %v1430, %v1496
        %v1538 = vsub.f32 %v1432, %v1499
        %v1539 = vsub.f32 %v1434, %v1499
        %v1540 = vsub.f32 %v1438, %v1502
        %v1541 = vsub.f32 %v1440, %v1502
        %v1542 = vsub.f32 %v1442, %v1505
        %v1543 = vsub.f32 %v1444, %v1505
        %v1544 = vsub.f32 %v1448, %v1508
        %v1545 = vsub.f32 %v1450, %v1508
        %v1546 = vsub.f32 %v1452, %v1511
        %v1547 = vsub.f32 %v1454, %v1511
        %v1548 = vsub.f32 %v1458, %v1514
        %v1549 = vsub.f32 %v1460, %v1514
        %v1550 = vsub.f32 %v1462, %v1517
        %v1551 = vsub.f32 %v1464, %v1517
        %v1552 = vsub.f32 %v1468, %v1520
        %v1553 = vsub.f32 %v1470, %v1520
        %v1554 = vsub.f32 %v1472, %v1523
        %v1555 = vsub.f32 %v1474, %v1523
        %v1556 = vmul.f32 %v1524, 1.442695
        %v1557 = vpow.pop %v1556
        %v1558 = vmul.f32 %v1525, 1.442695
        %v1559 = vpow.pop %v1558
        %v1560 = vmul.f32 %v1526, 1.442695
        %v1561 = vpow.pop %v1560
        %v1562 = vmul.f32 %v1527, 1.442695
        %v1563 = vpow.pop %v1562
        %v1564 = vmul.f32 %v1528, 1.442695
        %v1565 = vpow.pop %v1564
        %v1566 = vmul.f32 %v1529, 1.442695
        %v1567 = vpow.pop %v1566
        %v1568 = vmul.f32 %v1530, 1.442695
        %v1569 = vpow.pop %v1568
        %v1570 = vmul.f32 %v1531, 1.442695
        %v1571 = vpow.pop %v1570
        %v1572 = vmul.f32 %v1532, 1.442695
        %v1573 = vpow.pop %v1572
        %v1574 = vmul.f32 %v1533, 1.442695
        %v1575 = vpow.pop %v1574
        %v1576 = vmul.f32 %v1534, 1.442695
        %v1577 = vpow.pop %v1576
        %v1578 = vmul.f32 %v1535, 1.442695
        %v1579 = vpow.pop %v1578
        %v1580 = vmul.f32 %v1536, 1.442695
        %v1581 = vpow.pop %v1580
        %v1582 = vmul.f32 %v1537, 1.442695
        %v1583 = vpow.pop %v1582
        %v1584 = vmul.f32 %v1538, 1.442695
        %v1585 = vpow.pop %v1584
        %v1586 = vmul.f32 %v1539, 1.442695
        %v1587 = vpow.pop %v1586
        %v1588 = vmul.f32 %v1540, 1.442695
        %v1589 = vpow.pop %v1588
        %v1590 = vmul.f32 %v1541, 1.442695
        %v1591 = vpow.pop %v1590
        %v1592 = vmul.f32 %v1542, 1.442695
        %v1593 = vpow.pop %v1592
        %v1594 = vmul.f32 %v1543, 1.442695
        %v1595 = vpow.pop %v1594
        %v1596 = vmul.f32 %v1544, 1.442695
        %v1597 = vpow.pop %v1596
        %v1598 = vmul.f32 %v1545, 1.442695
        %v1599 = vpow.pop %v1598
        %v1600 = vmul.f32 %v1546, 1.442695
        %v1601 = vpow.pop %v1600
        %v1602 = vmul.f32 %v1547, 1.442695
        %v1603 = vpow.pop %v1602
        %v1604 = vmul.f32 %v1548, 1.442695
        %v1605 = vpow.pop %v1604
        %v1606 = vmul.f32 %v1549, 1.442695
        %v1607 = vpow.pop %v1606
        %v1608 = vmul.f32 %v1550, 1.442695
        %v1609 = vpow.pop %v1608
        %v1610 = vmul.f32 %v1551, 1.442695
        %v1611 = vpow.pop %v1610
        %v1612 = vmul.f32 %v1552, 1.442695
        %v1613 = vpow.pop %v1612
        %v1614 = vmul.f32 %v1553, 1.442695
        %v1615 = vpow.pop %v1614
        %v1616 = vmul.f32 %v1554, 1.442695
        %v1617 = vpow.pop %v1616
        %v1618 = vmul.f32 %v1555, 1.442695
        %v1619 = vpow.pop %v1618
        %v1620 = vadd.f32 %v1557, %v1559
        %1621 = vadd.xlane.f32.xlu0 %v1620
        %v1622 = vpop.xlane.xlu0 %1621
        %v1623 = vadd.f32 %v1561, %v1563
        %1624 = vadd.xlane.f32.xlu0 %v1623
        %v1625 = vpop.xlane.xlu0 %1624
        %v1626 = vadd.f32 %v1565, %v1567
        %1627 = vadd.xlane.f32.xlu0 %v1626
        %v1628 = vpop.xlane.xlu0 %1627
        %v1629 = vadd.f32 %v1569, %v1571
        %1630 = vadd.xlane.f32.xlu0 %v1629
        %v1631 = vpop.xlane.xlu0 %1630
        %v1632 = vadd.f32 %v1573, %v1575
        %1633 = vadd.xlane.f32.xlu0 %v1632
        %v1634 = vpop.xlane.xlu0 %1633
        %v1635 = vadd.f32 %v1577, %v1579
        %1636 = vadd.xlane.f32.xlu0 %v1635
        %v1637 = vpop.xlane.xlu0 %1636
        %v1638 = vadd.f32 %v1581, %v1583
        %1639 = vadd.xlane.f32.xlu0 %v1638
        %v1640 = vpop.xlane.xlu0 %1639
        %v1641 = vadd.f32 %v1585, %v1587
        %1642 = vadd.xlane.f32.xlu0 %v1641
        %v1643 = vpop.xlane.xlu0 %1642
        %v1644 = vadd.f32 %v1589, %v1591
        %1645 = vadd.xlane.f32.xlu0 %v1644
        %v1646 = vpop.xlane.xlu0 %1645
        %v1647 = vadd.f32 %v1593, %v1595
        %1648 = vadd.xlane.f32.xlu0 %v1647
        %v1649 = vpop.xlane.xlu0 %1648
        %v1650 = vadd.f32 %v1597, %v1599
        %1651 = vadd.xlane.f32.xlu0 %v1650
        %v1652 = vpop.xlane.xlu0 %1651
        %v1653 = vadd.f32 %v1601, %v1603
        %1654 = vadd.xlane.f32.xlu0 %v1653
        %v1655 = vpop.xlane.xlu0 %1654
        %v1656 = vadd.f32 %v1605, %v1607
        %1657 = vadd.xlane.f32.xlu0 %v1656
        %v1658 = vpop.xlane.xlu0 %1657
        %v1659 = vadd.f32 %v1609, %v1611
        %1660 = vadd.xlane.f32.xlu0 %v1659
        %v1661 = vpop.xlane.xlu0 %1660
        %v1662 = vadd.f32 %v1613, %v1615
        %1663 = vadd.xlane.f32.xlu0 %v1662
        %v1664 = vpop.xlane.xlu0 %1663
        %v1665 = vadd.f32 %v1617, %v1619
        %1666 = vadd.xlane.f32.xlu0 %v1665
        %v1667 = vpop.xlane.xlu0 %1666
        %v1668 = vpack.c.bf16 %v1561, %v1557
        %v1669 = vpack.c.bf16 %v1563, %v1559
        %v1670 = vpack.c.bf16 %v1569, %v1565
        %v1671 = vpack.c.bf16 %v1571, %v1567
        %v1672 = vpack.c.bf16 %v1577, %v1573
        %v1673 = vpack.c.bf16 %v1579, %v1575
        %v1674 = vpack.c.bf16 %v1585, %v1581
        %v1675 = vpack.c.bf16 %v1587, %v1583
        %v1676 = vpack.c.bf16 %v1593, %v1589
        %v1677 = vpack.c.bf16 %v1595, %v1591
        %v1678 = vpack.c.bf16 %v1601, %v1597
        %v1679 = vpack.c.bf16 %v1603, %v1599
        %v1680 = vpack.c.bf16 %v1609, %v1605
        %v1681 = vpack.c.bf16 %v1611, %v1607
        %v1682 = vpack.c.bf16 %v1617, %v1613
        %v1683 = vpack.c.bf16 %v1619, %v1615
        %v1684 = vld [vmem:[#allocation4] sm:$0xff]
        %v1685 = vld [vmem:[#allocation4 + $0x8] sm:$0xff]
        %v1686 = vld [vmem:[#allocation4 + $0x10] sm:$0xff]
        %v1687 = vld [vmem:[#allocation4 + $0x18] sm:$0xff]
        %v1688 = vld [vmem:[#allocation4 + $0x20] sm:$0xff]
        %v1689 = vld [vmem:[#allocation4 + $0x28] sm:$0xff]
        %v1690 = vld [vmem:[#allocation4 + $0x30] sm:$0xff]
        %v1691 = vld [vmem:[#allocation4 + $0x38] sm:$0xff]
        %v1692 = vld [vmem:[#allocation4 + $0x40] sm:$0xff]
        %v1693 = vld [vmem:[#allocation4 + $0x48] sm:$0xff]
        %v1694 = vld [vmem:[#allocation4 + $0x50] sm:$0xff]
        %v1695 = vld [vmem:[#allocation4 + $0x58] sm:$0xff]
        %v1696 = vld [vmem:[#allocation4 + $0x60] sm:$0xff]
        %v1697 = vld [vmem:[#allocation4 + $0x68] sm:$0xff]
        %v1698 = vld [vmem:[#allocation4 + $0x70] sm:$0xff]
        %v1699 = vld [vmem:[#allocation4 + $0x78] sm:$0xff]
        %1700 = vmatprep.subr.bf16.mxu0 0
        %1701 = vmatpush1.bf16.msra.mxu0 %v1684
        %1702 = vmatprep.subr.bf16.mxu0 0
        %1703 = vmatpush1.bf16.msra.mxu0 %v1685
        %1704 = vmatprep.subr.bf16.mxu0 0
        %1705 = vmatpush1.bf16.msra.mxu0 %v1686
        %1706 = vmatprep.subr.bf16.mxu0 0
        %1707 = vmatpush1.bf16.msra.mxu0 %v1687
        %1708 = vmatprep.subr.bf16.mxu0 0
        %1709 = vmatpush1.bf16.msra.mxu0 %v1688
        %1710 = vmatprep.subr.bf16.mxu0 0
        %1711 = vmatpush1.bf16.msra.mxu0 %v1689
        %1712 = vmatprep.subr.bf16.mxu0 0
        %1713 = vmatpush1.bf16.msra.mxu0 %v1690
        %1714 = vmatprep.subr.bf16.mxu0 0
        %1715 = vmatpush1.bf16.msra.mxu0 %v1691
        %1716 = vmatprep.subr.bf16.mxu0 0
        %1717 = vmatpush1.bf16.msra.mxu0 %v1692
        %1718 = vmatprep.subr.bf16.mxu0 0
        %1719 = vmatpush1.bf16.msra.mxu0 %v1693
        %1720 = vmatprep.subr.bf16.mxu0 0
        %1721 = vmatpush1.bf16.msra.mxu0 %v1694
        %1722 = vmatprep.subr.bf16.mxu0 0
        %1723 = vmatpush1.bf16.msra.mxu0 %v1695
        %1724 = vmatprep.subr.bf16.mxu0 0
        %1725 = vmatpush1.bf16.msra.mxu0 %v1696
        %1726 = vmatprep.subr.bf16.mxu0 0
        %1727 = vmatpush1.bf16.msra.mxu0 %v1697
        %1728 = vmatprep.subr.bf16.mxu0 0
        %1729 = vmatpush1.bf16.msra.mxu0 %v1698
        %1730 = vmatprep.subr.bf16.mxu0 0
        %1731 = vmatpush1.bf16.msra.mxu0 %v1699
        %1732 = vmatprep.mubr.bf16.mxu0 %v1669
        %1733 = vmatmul.mubr.bf16.gmra.mrb[0].mxu0 %v1668
        %v1734 = vpop.f32.mrb[0].mxu0
        %v1735 = vadd.f32 0.0, %v1734
        %v1736 = vpop.f32.mrb[0].mxu0
        %v1737 = vpop.f32.mrb[0].mxu0
        %v1738 = vadd.f32 0.0, %v1737
        %v1739 = vpop.f32.mrb[0].mxu0
        %1740 = vmatprep.mubr.bf16.mxu0 %v1671
        %1741 = vmatmul.mubr.bf16.gmra.mrb[0].mxu0 %v1670
        %v1742 = vpop.f32.mrb[0].mxu0
        %v1743 = vadd.f32 0.0, %v1742
        %v1744 = vpop.f32.mrb[0].mxu0
        %v1745 = vpop.f32.mrb[0].mxu0
        %v1746 = vadd.f32 0.0, %v1745
        %v1747 = vpop.f32.mrb[0].mxu0
        %1748 = vmatprep.mubr.bf16.mxu0 %v1673
        %1749 = vmatmul.mubr.bf16.gmra.mrb[0].mxu0 %v1672
        %v1750 = vpop.f32.mrb[0].mxu0
        %v1751 = vadd.f32 0.0, %v1750
        %v1752 = vpop.f32.mrb[0].mxu0
        %v1753 = vpop.f32.mrb[0].mxu0
        %v1754 = vadd.f32 0.0, %v1753
        %v1755 = vpop.f32.mrb[0].mxu0
        %1756 = vmatprep.mubr.bf16.mxu0 %v1675
        %1757 = vmatmul.mubr.bf16.gmra.mrb[0].mxu0 %v1674
        %v1758 = vpop.f32.mrb[0].mxu0
        %v1759 = vadd.f32 0.0, %v1758
        %v1760 = vpop.f32.mrb[0].mxu0
        %v1761 = vpop.f32.mrb[0].mxu0
        %v1762 = vadd.f32 0.0, %v1761
        %v1763 = vpop.f32.mrb[0].mxu0
        %1764 = vmatprep.mubr.bf16.mxu0 %v1677
        %1765 = vmatmul.mubr.bf16.gmra.mrb[0].mxu0 %v1676
        %v1766 = vpop.f32.mrb[0].mxu0
        %v1767 = vadd.f32 0.0, %v1766
        %v1768 = vpop.f32.mrb[0].mxu0
        %v1769 = vpop.f32.mrb[0].mxu0
        %v1770 = vadd.f32 0.0, %v1769
        %v1771 = vpop.f32.mrb[0].mxu0
        %1772 = vmatprep.mubr.bf16.mxu0 %v1679
        %1773 = vmatmul.mubr.bf16.gmra.mrb[0].mxu0 %v1678
        %v1774 = vpop.f32.mrb[0].mxu0
        %v1775 = vadd.f32 0.0, %v1774
        %v1776 = vpop.f32.mrb[0].mxu0
        %v1777 = vpop.f32.mrb[0].mxu0
        %v1778 = vadd.f32 0.0, %v1777
        %v1779 = vpop.f32.mrb[0].mxu0
        %1780 = vmatprep.mubr.bf16.mxu0 %v1681
        %1781 = vmatmul.mubr.bf16.gmra.mrb[0].mxu0 %v1680
        %v1782 = vpop.f32.mrb[0].mxu0
        %v1783 = vadd.f32 0.0, %v1782
        %v1784 = vpop.f32.mrb[0].mxu0
        %v1785 = vpop.f32.mrb[0].mxu0
        %v1786 = vadd.f32 0.0, %v1785
        %v1787 = vpop.f32.mrb[0].mxu0
        %1788 = vmatprep.mubr.bf16.mxu0 %v1683
        %1789 = vmatmul.mubr.bf16.gmra.mrb[0].mxu0 %v1682
        %v1790 = vpop.f32.mrb[0].mxu0
        %v1791 = vadd.f32 0.0, %v1790
        %v1792 = vpop.f32.mrb[0].mxu0
        %v1793 = vpop.f32.mrb[0].mxu0
        %v1794 = vadd.f32 0.0, %v1793
        %v1795 = vpop.f32.mrb[0].mxu0
        %1796 = vdwg.mxu0
        %v1797 = vrcp.pop %v1622
        %v1798 = vrcp.pop %v1625
        %v1799 = vrcp.pop %v1628
        %v1800 = vrcp.pop %v1631
        %v1801 = vrcp.pop %v1634
        %v1802 = vrcp.pop %v1637
        %v1803 = vrcp.pop %v1640
        %v1804 = vrcp.pop %v1643
        %v1805 = vrcp.pop %v1646
        %v1806 = vrcp.pop %v1649
        %v1807 = vrcp.pop %v1652
        %v1808 = vrcp.pop %v1655
        %v1809 = vrcp.pop %v1658
        %v1810 = vrcp.pop %v1661
        %v1811 = vrcp.pop %v1664
        %v1812 = vrcp.pop %v1667
        %v1813 = vmul.f32 %v1735, %v1797
        %v1814 = vmul.f32 %v1738, %v1798
        %v1815 = vmul.f32 %v1743, %v1799
        %v1816 = vmul.f32 %v1746, %v1800
        %v1817 = vmul.f32 %v1751, %v1801
        %v1818 = vmul.f32 %v1754, %v1802
        %v1819 = vmul.f32 %v1759, %v1803
        %v1820 = vmul.f32 %v1762, %v1804
        %v1821 = vmul.f32 %v1767, %v1805
        %v1822 = vmul.f32 %v1770, %v1806
        %v1823 = vmul.f32 %v1775, %v1807
        %v1824 = vmul.f32 %v1778, %v1808
        %v1825 = vmul.f32 %v1783, %v1809
        %v1826 = vmul.f32 %v1786, %v1810
        %v1827 = vmul.f32 %v1791, %v1811
        %v1828 = vmul.f32 %v1794, %v1812
        %v1829 = vpack.c.bf16 %v1814, %v1813
        %v1830 = vpack.c.bf16 %v1816, %v1815
        %v1831 = vpack.c.bf16 %v1818, %v1817
        %v1832 = vpack.c.bf16 %v1820, %v1819
        %v1833 = vpack.c.bf16 %v1822, %v1821
        %v1834 = vpack.c.bf16 %v1824, %v1823
        %v1835 = vpack.c.bf16 %v1826, %v1825
        %v1836 = vpack.c.bf16 %v1828, %v1827
        %v1837 = vld [vmem:[%s6] sm:$0xf]
        %v1838 = vld [vmem:[%s6 + $0x4] sm:$0xf]
        %v1839 = vld [vmem:[%s6 + $0x8] sm:$0xf]
        %v1840 = vld [vmem:[%s6 + $0xc] sm:$0xf]
        %v1841 = vld [vmem:[%s6 + $0x10] sm:$0xf]
        %v1842 = vld [vmem:[%s6 + $0x14] sm:$0xf]
        %v1843 = vld [vmem:[%s6 + $0x18] sm:$0xf]
        %v1844 = vld [vmem:[%s6 + $0x1c] sm:$0xf]
        %v1845 = vld [vmem:[%s7] sm:$0x1]
        %v1847 = vlaneseq
        %v1848 = vshrl.u32 %v1847, 7
        %v1849 = vsub.s32 0, %v1848
        %v1850 = vrot.slane %v1845, %v1849
        %v1860 = vunpack.c.l.b16 %v1837
        %v1861 = vunpack.c.l.b16 %v1838
        %v1862 = vunpack.c.l.b16 %v1839
        %v1863 = vunpack.c.l.b16 %v1840
        %v1864 = vunpack.c.l.b16 %v1841
        %v1865 = vunpack.c.l.b16 %v1842
        %v1866 = vunpack.c.l.b16 %v1843
        %v1867 = vunpack.c.l.b16 %v1844
        %v1868 = vpack.c.b16 %v1861, %v1860
        %v1869 = vpack.c.b16 %v1863, %v1862
        %v1870 = vpack.c.b16 %v1865, %v1864
        %v1871 = vpack.c.b16 %v1867, %v1866
        %v1877 = vsel %vm1290, %v1829, 0
        %v1880 = vsel %vm1290, %v1830, 0
        %v1883 = vsel %vm1290, %v1831, 0
        %v1886 = vsel %vm1290, %v1832, 0
        %v1889 = vsel %vm1290, %v1833, 0
        %v1892 = vsel %vm1290, %v1834, 0
        %v1895 = vsel %vm1290, %v1835, 0
        %v1898 = vsel %vm1290, %v1836, 0
        %1900 = vmatprep.subr.bf16.mxu0 0
        %1901 = vmatpush1.bf16.msra.mxu0 %v1868
        %1902 = vmatprep.subr.bf16.mxu0 0
        %1903 = vmatpush1.bf16.msra.mxu0 %v1869
        %1904 = vmatprep.subr.bf16.mxu0 0
        %1905 = vmatpush1.bf16.msra.mxu0 %v1870
        %1906 = vmatprep.subr.bf16.mxu0 0
        %1907 = vmatpush1.bf16.msra.mxu0 %v1871
        %1908 = vmatprep.subr.bf16.mxu0 0
        %1909 = vmatpush1.bf16.msra.mxu0 0
        %1910 = vmatprep.subr.bf16.mxu0 0
        %1911 = vmatpush1.bf16.msra.mxu0 0
        %1912 = vmatprep.subr.bf16.mxu0 0
        %1913 = vmatpush1.bf16.msra.mxu0 0
        %1914 = vmatprep.subr.bf16.mxu0 0
        %1915 = vmatpush1.bf16.msra.mxu0 0
        %1916 = vmatprep.subr.bf16.mxu0 0
        %1917 = vmatpush1.bf16.msra.mxu0 0
        %1918 = vmatprep.subr.bf16.mxu0 0
        %1919 = vmatpush1.bf16.msra.mxu0 0
        %1920 = vmatprep.subr.bf16.mxu0 0
        %1921 = vmatpush1.bf16.msra.mxu0 0
        %1922 = vmatprep.subr.bf16.mxu0 0
        %1923 = vmatpush1.bf16.msra.mxu0 0
        %1924 = vmatprep.subr.bf16.mxu0 0
        %1925 = vmatpush1.bf16.msra.mxu0 0
        %1926 = vmatprep.subr.bf16.mxu0 0
        %1927 = vmatpush1.bf16.msra.mxu0 0
        %1928 = vmatprep.subr.bf16.mxu0 0
        %1929 = vmatpush1.bf16.msra.mxu0 0
        %1930 = vmatprep.subr.bf16.mxu0 0
        %1931 = vmatpush1.bf16.msra.mxu0 0
        %1932 = vmatprep.mubr.bf16.mxu0 0
        %1933 = vmatmul.mubr.bf16.gmra.mrb[0].mxu0 %v1877
        %v1934 = vpop.f32.mrb[0].mxu0
        %v1935 = vadd.f32 %v1850, %v1934
        %v1936 = vpop.f32.mrb[0].mxu0
        %v1937 = vpop.f32.mrb[0].mxu0
        %v1938 = vadd.f32 %v1850, %v1937
        %v1939 = vpop.f32.mrb[0].mxu0
        %1940 = vmatprep.mubr.bf16.mxu0 0
        %1941 = vmatmul.mubr.bf16.gmra.mrb[0].mxu0 %v1880
        %v1942 = vpop.f32.mrb[0].mxu0
        %v1943 = vadd.f32 %v1850, %v1942
        %v1944 = vpop.f32.mrb[0].mxu0
        %v1945 = vpop.f32.mrb[0].mxu0
        %v1946 = vadd.f32 %v1850, %v1945
        %v1947 = vpop.f32.mrb[0].mxu0
        %1948 = vmatprep.mubr.bf16.mxu0 0
        %1949 = vmatmul.mubr.bf16.gmra.mrb[0].mxu0 %v1883
        %v1950 = vpop.f32.mrb[0].mxu0
        %v1951 = vadd.f32 %v1850, %v1950
        %v1952 = vpop.f32.mrb[0].mxu0
        %v1953 = vpop.f32.mrb[0].mxu0
        %v1954 = vadd.f32 %v1850, %v1953
        %v1955 = vpop.f32.mrb[0].mxu0
        %1956 = vmatprep.mubr.bf16.mxu0 0
        %1957 = vmatmul.mubr.bf16.gmra.mrb[0].mxu0 %v1886
        %v1958 = vpop.f32.mrb[0].mxu0
        %v1959 = vadd.f32 %v1850, %v1958
        %v1960 = vpop.f32.mrb[0].mxu0
        %v1961 = vpop.f32.mrb[0].mxu0
        %v1962 = vadd.f32 %v1850, %v1961
        %v1963 = vpop.f32.mrb[0].mxu0
        %1964 = vmatprep.mubr.bf16.mxu0 0
        %1965 = vmatmul.mubr.bf16.gmra.mrb[0].mxu0 %v1889
        %v1966 = vpop.f32.mrb[0].mxu0
        %v1967 = vadd.f32 %v1850, %v1966
        %v1968 = vpop.f32.mrb[0].mxu0
        %v1969 = vpop.f32.mrb[0].mxu0
        %v1970 = vadd.f32 %v1850, %v1969
        %v1971 = vpop.f32.mrb[0].mxu0
        %1972 = vmatprep.mubr.bf16.mxu0 0
        %1973 = vmatmul.mubr.bf16.gmra.mrb[0].mxu0 %v1892
        %v1974 = vpop.f32.mrb[0].mxu0
        %v1975 = vadd.f32 %v1850, %v1974
        %v1976 = vpop.f32.mrb[0].mxu0
        %v1977 = vpop.f32.mrb[0].mxu0
        %v1978 = vadd.f32 %v1850, %v1977
        %v1979 = vpop.f32.mrb[0].mxu0
        %1980 = vmatprep.mubr.bf16.mxu0 0
        %1981 = vmatmul.mubr.bf16.gmra.mrb[0].mxu0 %v1895
        %v1982 = vpop.f32.mrb[0].mxu0
        %v1983 = vadd.f32 %v1850, %v1982
        %v1984 = vpop.f32.mrb[0].mxu0
        %v1985 = vpop.f32.mrb[0].mxu0
        %v1986 = vadd.f32 %v1850, %v1985
        %v1987 = vpop.f32.mrb[0].mxu0
        %1988 = vmatprep.mubr.bf16.mxu0 0
        %1989 = vmatmul.mubr.bf16.gmra.mrb[0].mxu0 %v1898
        %v1990 = vpop.f32.mrb[0].mxu0
        %v1991 = vadd.f32 %v1850, %v1990
        %v1992 = vpop.f32.mrb[0].mxu0
        %v1993 = vpop.f32.mrb[0].mxu0
        %v1994 = vadd.f32 %v1850, %v1993
        %v1995 = vpop.f32.mrb[0].mxu0
        %1996 = vdwg.mxu0
        %s1997 = scalar_lea.vmem %s317, %s1261
        %v1998 = vld [vmem:[%s1997] sm:$0xff]
        %v1999 = vld [vmem:[%s1997 + $0x8] sm:$0xff]
        %v2000 = vld [vmem:[%s1997 + $0x10] sm:$0xff]
        %v2001 = vld [vmem:[%s1997 + $0x18] sm:$0xff]
        %v2002 = vld [vmem:[%s1997 + $0x20] sm:$0xff]
        %v2003 = vld [vmem:[%s1997 + $0x28] sm:$0xff]
        %v2004 = vld [vmem:[%s1997 + $0x30] sm:$0xff]
        %v2005 = vld [vmem:[%s1997 + $0x38] sm:$0xff]
        %v2006 = vld [vmem:[%s1997 + $0x40] sm:$0xff]
        %v2007 = vld [vmem:[%s1997 + $0x48] sm:$0xff]
        %v2008 = vld [vmem:[%s1997 + $0x50] sm:$0xff]
        %v2009 = vld [vmem:[%s1997 + $0x58] sm:$0xff]
        %v2010 = vld [vmem:[%s1997 + $0x60] sm:$0xff]
        %v2011 = vld [vmem:[%s1997 + $0x68] sm:$0xff]
        %v2012 = vld [vmem:[%s1997 + $0x70] sm:$0xff]
        %v2013 = vld [vmem:[%s1997 + $0x78] sm:$0xff]
        %v2014 = vadd.f32 %v1998, %v1935
        %v2015 = vadd.f32 %v1999, %v1938
        %v2016 = vadd.f32 %v2000, %v1943
        %v2017 = vadd.f32 %v2001, %v1946
        %v2018 = vadd.f32 %v2002, %v1951
        %v2019 = vadd.f32 %v2003, %v1954
        %v2020 = vadd.f32 %v2004, %v1959
        %v2021 = vadd.f32 %v2005, %v1962
        %v2022 = vadd.f32 %v2006, %v1967
        %v2023 = vadd.f32 %v2007, %v1970
        %v2024 = vadd.f32 %v2008, %v1975
        %v2025 = vadd.f32 %v2009, %v1978
        %v2026 = vadd.f32 %v2010, %v1983
        %v2027 = vadd.f32 %v2011, %v1986
        %v2028 = vadd.f32 %v2012, %v1991
        %v2029 = vadd.f32 %v2013, %v1994
        %2030 = vst.msk [vmem:[%s312] sm:$0xff] %vm1290, %v2014
        %2031 = vst.msk [vmem:[%s312 + $0x8] sm:$0xff] %vm1290, %v2015
        %2032 = vst.msk [vmem:[%s312 + $0x10] sm:$0xff] %vm1290, %v2016
        %2033 = vst.msk [vmem:[%s312 + $0x18] sm:$0xff] %vm1290, %v2017
        %2034 = vst.msk [vmem:[%s312 + $0x20] sm:$0xff] %vm1290, %v2018
        %2035 = vst.msk [vmem:[%s312 + $0x28] sm:$0xff] %vm1290, %v2019
        %2036 = vst.msk [vmem:[%s312 + $0x30] sm:$0xff] %vm1290, %v2020
        %2037 = vst.msk [vmem:[%s312 + $0x38] sm:$0xff] %vm1290, %v2021
        %2038 = vst.msk [vmem:[%s312 + $0x40] sm:$0xff] %vm1290, %v2022
        %2039 = vst.msk [vmem:[%s312 + $0x48] sm:$0xff] %vm1290, %v2023
        %2040 = vst.msk [vmem:[%s312 + $0x50] sm:$0xff] %vm1290, %v2024
        %2041 = vst.msk [vmem:[%s312 + $0x58] sm:$0xff] %vm1290, %v2025
        %2042 = vst.msk [vmem:[%s312 + $0x60] sm:$0xff] %vm1290, %v2026
        %2043 = vst.msk [vmem:[%s312 + $0x68] sm:$0xff] %vm1290, %v2027
        %2044 = vst.msk [vmem:[%s312 + $0x70] sm:$0xff] %vm1290, %v2028
        %2045 = vst.msk [vmem:[%s312 + $0x78] sm:$0xff] %vm1290, %v2029
        %s2046 = sand.u32 %s217, 1
        %s2047 = scalar_lea.sflag [#allocation6], %s2046
        %s2048 = sand.u32 %s217, 1
        %s2049 = smul.addr %s2048, 128
        %s2050 = scalar_lea.vmem [#allocation5], %s2049
        // Predicated region
        $region57: #{attn_block_forward.1} parent=51 // pred_check
          %p2051 = pneg %p227
        $region58: #{attn_block_forward.1} parent=51 // pred_check_branch
          %2053 = sbr.rel (%p2051) target = $region60
        $region59: #{attn_block_forward.1} parent=51 // pred_region
          %s2054 = smul.u32 16, %s27
          %s2056 = ssub.s32 2048, 2048
          %2057 = vsyncadd %s2047, %s2056
          %s2058 = smul.addr %s26, 32
          %s2059 = sadd.s32 %s2054, %s2058
          %s2060 = smul.addr %s2059, 128
          %s2061 = scalar_lea.hbm %s8, %s2060
          %s2062 = sshll.u32 %s2050, 4
          %s2063 = int_to_ptr.vmem [resolvable:$true] %s2062
          %2068 = dma.vmem_to_hbm [thread:$0]  %s2063, 2048, %s2061, %s2047, 128, 128, 8
        $region60: #{attn_block_forward.1} parent=51 // pred_fallthru
          _
      $region52: #{attn_block_forward.1} parent=5 // pred_fallthru
        _
      %p2069 = scmp.le.s32.totalorder 2, %s17
      // Predicated region
      $region61: #{attn_block_forward.1} parent=5 // pred_check
        %p2070 = pneg %p2069
      $region62: #{attn_block_forward.1} parent=5 // pred_check_branch
        %2072 = sbr.rel (%p2070) target = $region64
      $region63: #{attn_block_forward.1} parent=5 // pred_region
        %s2073 = ssub.s32 %s17, 2
        // Predicated region
        $region65: #{attn_block_forward.1} parent=63 // pred_check
          %p2074 = pneg %p233
        $region66: #{attn_block_forward.1} parent=63 // pred_check_branch
          %2076 = sbr.rel (%p2074) target = $region68
        $region67: #{attn_block_forward.1} parent=63 // pred_region
          %s2077 = sand.u32 %s218, 1
          %s2078 = scalar_lea.sflag [#allocation6], %s2077
          %s2079 = sand.u32 %s218, 1
          %s2080 = smul.addr %s2079, 128
          %s2081 = scalar_lea.vmem [#allocation5], %s2080
          %2082 = dma.done %s2078, 2048
        $region68: #{attn_block_forward.1} parent=63 // pred_fallthru
          _
      $region64: #{attn_block_forward.1} parent=5 // pred_fallthru
        _
    $region6: #{attn_block_forward.1} parent=1 // loop_footer
      %s21 = sadd.s32 1, %s17
    $region7: #{attn_block_forward.1} parent=1 // loop_footer_branch
      %16 = sbr.rel target = $region3
    $region8: #{attn_block_forward.1} parent=1 // loop_exit
      _
    %2083 = vsyncpa [#allocation6], 1
    %s2084 = scalar_lea.sflag [#allocation6], 1
    %2085 = vsyncpa %s2084, 1

</llo_original>
